<compile_context>
chip_gen: v6e
topology: v6e:2x2x1
jax: 0.10.0
libtpu: 0.0.40
codegen_flags: <defaults>
</compile_context>

<pallas_src>
import jax
import jax.numpy as jnp
from jax.experimental import pallas as pl
from jax.experimental.pallas import tpu as pltpu

# Storage dtype for activations, im2col patches and conv weights (MXU-native).
# All accumulation and all element-wise epilogue math stays in float32.
STORE_DTYPE = jnp.bfloat16


def _round_up(x, m):
    return ((x + m - 1) // m) * m


def _pick_tile_m(mp, target=512):
    """Tile size along the pooled-pixel (lane) axis: multiple of 128, at most `target`."""
    if mp >= target:
        return target
    return _round_up(mp, 128)


# ----------------------------------------------------------------------------
# Pallas kernels
# ----------------------------------------------------------------------------
def _conv_relu_pool_kernel(a_ref, w_ref, b_ref, o_ref):
    """Fused 3x3-valid conv (as matmul) + bias + ReLU + 2x2/2 max-pool.

    a_ref: (4, K, TM)  pool-quadrant-major transposed im2col patches (bf16)
    w_ref: (Cout, K)   conv weights as a matmul matrix (bf16)
    b_ref: (Cout, 1)   bias (f32)
    o_ref: (Cout, TM)  pooled activations (bf16)
    """
    w = w_ref[...]
    acc = jnp.dot(w, a_ref[0], preferred_element_type=jnp.float32)
    for q in range(1, 4):
        acc = jnp.maximum(acc, jnp.dot(w, a_ref[q], preferred_element_type=jnp.float32))
    # Bias is per-channel and ReLU is monotone, so add/clamp after the pooling max (fewer VPU ops).
    acc = jnp.maximum(acc + b_ref[...], 0.0)
    o_ref[...] = acc.astype(o_ref.dtype)


def _conv_relu_pool_linear_kernel(a_ref, w_ref, b_ref, wl_ref, bl_ref, o_ref):
    """Fused tail: conv3 + bias + ReLU + pool (-> 1x1 spatial) + flatten + Linear(16 -> 10)."""
    w = w_ref[...]
    acc = jnp.dot(w, a_ref[0], preferred_element_type=jnp.float32)
    for q in range(1, 4):
        acc = jnp.maximum(acc, jnp.dot(w, a_ref[q], preferred_element_type=jnp.float32))
    feat = jnp.maximum(acc + b_ref[...], 0.0)                               # (16, TM) f32
    logits = jnp.dot(wl_ref[...], feat, preferred_element_type=jnp.float32) + bl_ref[...]
    o_ref[...] = logits.astype(o_ref.dtype)


# ----------------------------------------------------------------------------
# Pallas wrappers
# ----------------------------------------------------------------------------
_COMPILER_PARAMS = pltpu.CompilerParams(
    dimension_semantics=("parallel",),      # M-tiles are independent -> both v7x TensorCores
    vmem_limit_bytes=32 * 1024 * 1024,      # explicit cap; safe on v7x's 64 MiB physical VMEM
)


def _pad_m(a, mp_pad):
    mp = a.shape[-1]
    if mp_pad == mp:
        return a
    return jnp.pad(a, ((0, 0), (0, 0), (0, mp_pad - mp)))


def conv_relu_pool(a, w_t, b):
    """a: (4, K, Mp) patches; w_t: (Cout, K); b: (Cout, 1) -> (Cout, Mp) pooled activations."""
    _, K, Mp = a.shape
    Cout = w_t.shape[0]
    tm = _pick_tile_m(Mp)
    mp_pad = _round_up(Mp, tm)
    a = _pad_m(a, mp_pad)
    out = pl.pallas_call(
        _conv_relu_pool_kernel,
        out_shape=jax.ShapeDtypeStruct((Cout, mp_pad), STORE_DTYPE),
        grid=(mp_pad // tm,),
        in_specs=[
            pl.BlockSpec((4, K, tm), lambda i: (0, 0, i)),
            pl.BlockSpec((Cout, K), lambda i: (0, 0)),     # stays resident across the grid
            pl.BlockSpec((Cout, 1), lambda i: (0, 0)),
        ],
        out_specs=pl.BlockSpec((Cout, tm), lambda i: (0, i)),
        compiler_params=_COMPILER_PARAMS,
    )(a, w_t, b)
    return out[:, :Mp]


def conv_relu_pool_linear(a, w_t, b, wl, bl):
    """Fused tail block. a: (4, K, Mp=B). Returns logits^T of shape (10, Mp) in f32."""
    _, K, Mp = a.shape
    Cout = w_t.shape[0]
    Nout = wl.shape[0]
    tm = _pick_tile_m(Mp)
    mp_pad = _round_up(Mp, tm)
    a = _pad_m(a, mp_pad)
    out = pl.pallas_call(
        _conv_relu_pool_linear_kernel,
        out_shape=jax.ShapeDtypeStruct((Nout, mp_pad), jnp.float32),
        grid=(mp_pad // tm,),
        in_specs=[
            pl.BlockSpec((4, K, tm), lambda i: (0, 0, i)),
            pl.BlockSpec((Cout, K), lambda i: (0, 0)),
            pl.BlockSpec((Cout, 1), lambda i: (0, 0)),
            pl.BlockSpec((Nout, Cout), lambda i: (0, 0)),
            pl.BlockSpec((Nout, 1), lambda i: (0, 0)),
        ],
        out_specs=pl.BlockSpec((Nout, tm), lambda i: (0, i)),
        compiler_params=_COMPILER_PARAMS,
    )(a, w_t, b, wl, bl)
    return out[:, :Mp]


# ----------------------------------------------------------------------------
# XLA glue: pool-quadrant transposed im2col + parameter preparation
# ----------------------------------------------------------------------------
def _pool_patches_T(x_cbhw, kh=3, kw=3):
    """Pool-quadrant-major transposed im2col for conv(3x3, valid) followed by maxpool(2x2, floor).

    x_cbhw: activations laid out (Cin, B, H, W).
    Returns A of shape (4, kh*kw*Cin, B*Hp*Wp) with
      A[2*dy+dx, cin*9 + i*3 + j, (b*Hp+hp)*Wp + wp] = x[cin, b, 2*hp+dy+i, 2*wp+dx+j]
    so that the max over the leading quadrant axis of (W @ A) is exactly pool(relu(conv(x)))
    (per-channel bias and ReLU commute with the max). Conv pixels cropped by floor-mode pooling
    are never materialized.
    """
    C, B, H, W = x_cbhw.shape
    Hp, Wp = (H - kh + 1) // 2, (W - kw + 1) // 2
    K = C * kh * kw
    quads = []
    for dy in range(2):
        for dx in range(2):
            taps = []
            for i in range(kh):
                for j in range(kw):
                    r0, c0 = dy + i, dx + j
                    sl = x_cbhw[:, :, r0:r0 + 2 * Hp - 1:2, c0:c0 + 2 * Wp - 1:2]  # (C,B,Hp,Wp)
                    taps.append(sl)
            t = jnp.stack(taps, axis=1)                  # (C, 9, B, Hp, Wp): K index = cin*9+i*3+j
            quads.append(t.reshape(K, B * Hp * Wp))
    return jnp.stack(quads, axis=0), (B, Hp, Wp)         # (4, K, Mp)


def init_params(key):
    """PyTorch-layout parameters for MNIST_CNN."""
    ks = jax.random.split(key, 8)
    s = 0.05
    return {
        "w1": jax.random.normal(ks[0], (16, 1, 3, 3), jnp.float32) * s,
        "b1": jax.random.normal(ks[1], (16,), jnp.float32) * s,
        "w2": jax.random.normal(ks[2], (32, 16, 3, 3), jnp.float32) * s,
        "b2": jax.random.normal(ks[3], (32,), jnp.float32) * s,
        "w3": jax.random.normal(ks[4], (16, 32, 3, 3), jnp.float32) * s,
        "b3": jax.random.normal(ks[5], (16,), jnp.float32) * s,
        "wl": jax.random.normal(ks[6], (10, 16), jnp.float32) * s,   # PyTorch Linear: (out, in)
        "bl": jax.random.normal(ks[7], (10,), jnp.float32) * s,
    }


def prepare_params(params):
    """One-time conversion of PyTorch-layout params to kernel-ready matrices (hoisted out of fwd)."""
    return {
        # (Cout, Cin, 3, 3) -> (Cout, Cin*9); column order matches _pool_patches_T's K ordering.
        "w1t": params["w1"].reshape(16, 1 * 9).astype(STORE_DTYPE),
        "b1": params["b1"].reshape(16, 1).astype(jnp.float32),
        "w2t": params["w2"].reshape(32, 16 * 9).astype(STORE_DTYPE),
        "b2": params["b2"].reshape(32, 1).astype(jnp.float32),
        "w3t": params["w3"].reshape(16, 32 * 9).astype(STORE_DTYPE),
        "b3": params["b3"].reshape(16, 1).astype(jnp.float32),
        "wl": params["wl"].astype(jnp.float32),                      # (10, 16), used as-is
        "bl": params["bl"].reshape(10, 1).astype(jnp.float32),
    }


def mnist_cnn_forward(x_nchw, prep):
    """Forward pass of MNIST_CNN. x_nchw: (B, 1, 28, 28). Returns (B, 10) logits (f32)."""
    B = x_nchw.shape[0]
    # Channel-major (Cin, B, H, W) layout keeps channels in sublanes / pixels in lanes everywhere.
    x = jnp.transpose(x_nchw, (1, 0, 2, 3)).astype(STORE_DTYPE)

    # Block 1: conv(1->16) + ReLU + pool -> (16, B, 13, 13)
    a, (_, Hp, Wp) = _pool_patches_T(x)
    x = conv_relu_pool(a, prep["w1t"], prep["b1"]).reshape(16, B, Hp, Wp)

    # Block 2: conv(16->32) + ReLU + pool -> (32, B, 5, 5)
    a, (_, Hp, Wp) = _pool_patches_T(x)
    x = conv_relu_pool(a, prep["w2t"], prep["b2"]).reshape(32, B, Hp, Wp)

    # Block 3 (fused tail): conv(32->16) + ReLU + pool (->1x1) + flatten + Linear(16->10)
    a, _ = _pool_patches_T(x)
    logits_t = conv_relu_pool_linear(a, prep["w3t"], prep["b3"], prep["wl"], prep["bl"])  # (10, B)
    return jnp.transpose(logits_t, (1, 0))


if __name__ == "__main__":
    key = jax.random.PRNGKey(0)
    kx, kp = jax.random.split(key)
    B = 8   # small, but exercises a multi-step grid + M-padding in block 1 (Mp = 8*169 = 1352)
    x = jax.random.normal(kx, (B, 1, 28, 28), jnp.float32)
    prep = prepare_params(init_params(kp))

    fwd = jax.jit(mnist_cnn_forward)
    logits = fwd(x, prep)
    jax.block_until_ready(logits)
    assert logits.shape == (B, 10), logits.shape
    assert bool(jnp.all(jnp.isfinite(logits))), "non-finite logits"
    print("KERNEL_OK")
</pallas_src>

<mosaic_0001>
module attributes {stable_mosaic.version = 11 : i64} {
  func.func @_conv_relu_pool_kernel(%arg0: i32, %arg1: memref<4x9x512xbf16, #tpu.memory_space<vmem>>, %arg2: memref<16x9xbf16, #tpu.memory_space<vmem>>, %arg3: memref<16x1xf32, #tpu.memory_space<vmem>>, %arg4: memref<16x512xbf16, #tpu.memory_space<vmem>>) attributes {dimension_semantics = [#tpu.dimension_semantics<parallel>], iteration_bounds = array<i64: 3>, scalar_prefetch = 0 : i64, scratch_operands = 0 : i64, tpu.core_type = #tpu.core_type<tc>, window_params = [{transform_indices = @transform_0, window_bounds = array<i64: 4, 9, 512>}, {pipeline_mode = #tpu.pipeline_mode<synchronous>, transform_indices = @transform_1, window_bounds = array<i64: 16, 9>}, {pipeline_mode = #tpu.pipeline_mode<synchronous>, transform_indices = @transform_2, window_bounds = array<i64: 16, 1>}, {transform_indices = @transform_3, window_bounds = array<i64: 16, 512>}]} {
    %c0 = arith.constant 0 : index
    %c0_0 = arith.constant 0 : index
    %0 = vector.load %arg2[%c0, %c0_0] : memref<16x9xbf16, #tpu.memory_space<vmem>>, vector<16x9xbf16>
    %c0_1 = arith.constant 0 : index
    %c0_2 = arith.constant 0 : index
    %c0_3 = arith.constant 0 : index
    %1 = vector.load %arg1[%c0_1, %c0_2, %c0_3] : memref<4x9x512xbf16, #tpu.memory_space<vmem>>, vector<1x9x512xbf16>
    %2 = vector.shape_cast %1 : vector<1x9x512xbf16> to vector<9x512xbf16>
    %cst = arith.constant dense<0.000000e+00> : vector<16x512xf32>
    %3 = tpu.matmul %0, %2, %cst {dimension_numbers = #tpu.dot_dimension_numbers<[1], [0], [0], [1], [0, 0, 1, 1], [], []>} : vector<16x9xbf16>, vector<9x512xbf16>, vector<16x512xf32> -> vector<16x512xf32>
    %c1 = arith.constant 1 : index
    %c0_4 = arith.constant 0 : index
    %c0_5 = arith.constant 0 : index
    %4 = vector.load %arg1[%c1, %c0_4, %c0_5] : memref<4x9x512xbf16, #tpu.memory_space<vmem>>, vector<1x9x512xbf16>
    %5 = vector.shape_cast %4 : vector<1x9x512xbf16> to vector<9x512xbf16>
    %cst_6 = arith.constant dense<0.000000e+00> : vector<16x512xf32>
    %6 = tpu.matmul %0, %5, %cst_6 {dimension_numbers = #tpu.dot_dimension_numbers<[1], [0], [0], [1], [0, 0, 1, 1], [], []>} : vector<16x9xbf16>, vector<9x512xbf16>, vector<16x512xf32> -> vector<16x512xf32>
    %7 = arith.maximumf %3, %6 : vector<16x512xf32>
    %c2 = arith.constant 2 : index
    %c0_7 = arith.constant 0 : index
    %c0_8 = arith.constant 0 : index
    %8 = vector.load %arg1[%c2, %c0_7, %c0_8] : memref<4x9x512xbf16, #tpu.memory_space<vmem>>, vector<1x9x512xbf16>
    %9 = vector.shape_cast %8 : vector<1x9x512xbf16> to vector<9x512xbf16>
    %cst_9 = arith.constant dense<0.000000e+00> : vector<16x512xf32>
    %10 = tpu.matmul %0, %9, %cst_9 {dimension_numbers = #tpu.dot_dimension_numbers<[1], [0], [0], [1], [0, 0, 1, 1], [], []>} : vector<16x9xbf16>, vector<9x512xbf16>, vector<16x512xf32> -> vector<16x512xf32>
    %11 = arith.maximumf %7, %10 : vector<16x512xf32>
    %c3 = arith.constant 3 : index
    %c0_10 = arith.constant 0 : index
    %c0_11 = arith.constant 0 : index
    %12 = vector.load %arg1[%c3, %c0_10, %c0_11] : memref<4x9x512xbf16, #tpu.memory_space<vmem>>, vector<1x9x512xbf16>
    %13 = vector.shape_cast %12 : vector<1x9x512xbf16> to vector<9x512xbf16>
    %cst_12 = arith.constant dense<0.000000e+00> : vector<16x512xf32>
    %14 = tpu.matmul %0, %13, %cst_12 {dimension_numbers = #tpu.dot_dimension_numbers<[1], [0], [0], [1], [0, 0, 1, 1], [], []>} : vector<16x9xbf16>, vector<9x512xbf16>, vector<16x512xf32> -> vector<16x512xf32>
    %15 = arith.maximumf %11, %14 : vector<16x512xf32>
    %c0_13 = arith.constant 0 : index
    %c0_14 = arith.constant 0 : index
    %16 = vector.load %arg3[%c0_13, %c0_14] : memref<16x1xf32, #tpu.memory_space<vmem>>, vector<16x1xf32>
    %17 = vector.broadcast %16 : vector<16x1xf32> to vector<16x512xf32>
    %18 = arith.addf %15, %17 : vector<16x512xf32>
    %cst_15 = arith.constant 0.000000e+00 : f32
    %19 = vector.broadcast %cst_15 : f32 to vector<16x512xf32>
    %20 = arith.maximumf %18, %19 : vector<16x512xf32>
    %21 = arith.truncf %20 : vector<16x512xf32> to vector<16x512xbf16>
    %c0_16 = arith.constant 0 : index
    %c0_17 = arith.constant 0 : index
    %22 = vector.load %arg4[%c0_16, %c0_17] : memref<16x512xbf16, #tpu.memory_space<vmem>>, vector<16x512xbf16>
    tpu.vector_store %arg4[%c0_16, %c0_17], %21 {strides = array<i32>} : memref<16x512xbf16, #tpu.memory_space<vmem>>, vector<16x512xbf16>,
    return
  }
  func.func @transform_0(%arg0: i32) -> (i32, i32, i32) {
    %c0_i32 = arith.constant 0 : i32
    %c0_i32_0 = arith.constant 0 : i32
    %c0_i32_1 = arith.constant 0 : i32
    return %c0_i32, %c0_i32_0, %arg0 : i32, i32, i32
  }
  func.func @transform_1(%arg0: i32) -> (i32, i32) {
    %c0_i32 = arith.constant 0 : i32
    %c0_i32_0 = arith.constant 0 : i32
    %c0_i32_1 = arith.constant 0 : i32
    return %c0_i32, %c0_i32_0 : i32, i32
  }
  func.func @transform_2(%arg0: i32) -> (i32, i32) {
    %c0_i32 = arith.constant 0 : i32
    %c0_i32_0 = arith.constant 0 : i32
    %c0_i32_1 = arith.constant 0 : i32
    return %c0_i32, %c0_i32_0 : i32, i32
  }
  func.func @transform_3(%arg0: i32) -> (i32, i32) {
    %c0_i32 = arith.constant 0 : i32
    %c0_i32_0 = arith.constant 0 : i32
    return %c0_i32, %arg0 : i32, i32
  }
}

module attributes {stable_mosaic.version = 11 : i64} {
  func.func @_conv_relu_pool_kernel(%arg0: i32, %arg1: memref<4x144x256xbf16, #tpu.memory_space<vmem>>, %arg2: memref<32x144xbf16, #tpu.memory_space<vmem>>, %arg3: memref<32x1xf32, #tpu.memory_space<vmem>>, %arg4: memref<32x256xbf16, #tpu.memory_space<vmem>>) attributes {dimension_semantics = [#tpu.dimension_semantics<parallel>], iteration_bounds = array<i64: 1>, scalar_prefetch = 0 : i64, scratch_operands = 0 : i64, tpu.core_type = #tpu.core_type<tc>, window_params = [{transform_indices = @transform_0, window_bounds = array<i64: 4, 144, 256>}, {pipeline_mode = #tpu.pipeline_mode<synchronous>, transform_indices = @transform_1, window_bounds = array<i64: 32, 144>}, {pipeline_mode = #tpu.pipeline_mode<synchronous>, transform_indices = @transform_2, window_bounds = array<i64: 32, 1>}, {transform_indices = @transform_3, window_bounds = array<i64: 32, 256>}]} {
    %c0 = arith.constant 0 : index
    %c0_0 = arith.constant 0 : index
    %0 = vector.load %arg2[%c0, %c0_0] : memref<32x144xbf16, #tpu.memory_space<vmem>>, vector<32x144xbf16>
    %c0_1 = arith.constant 0 : index
    %c0_2 = arith.constant 0 : index
    %c0_3 = arith.constant 0 : index
    %1 = vector.load %arg1[%c0_1, %c0_2, %c0_3] : memref<4x144x256xbf16, #tpu.memory_space<vmem>>, vector<1x144x256xbf16>
    %2 = vector.shape_cast %1 : vector<1x144x256xbf16> to vector<144x256xbf16>
    %cst = arith.constant dense<0.000000e+00> : vector<32x256xf32>
    %3 = tpu.matmul %0, %2, %cst {dimension_numbers = #tpu.dot_dimension_numbers<[1], [0], [0], [1], [0, 0, 1, 1], [], []>} : vector<32x144xbf16>, vector<144x256xbf16>, vector<32x256xf32> -> vector<32x256xf32>
    %c1 = arith.constant 1 : index
    %c0_4 = arith.constant 0 : index
    %c0_5 = arith.constant 0 : index
    %4 = vector.load %arg1[%c1, %c0_4, %c0_5] : memref<4x144x256xbf16, #tpu.memory_space<vmem>>, vector<1x144x256xbf16>
    %5 = vector.shape_cast %4 : vector<1x144x256xbf16> to vector<144x256xbf16>
    %cst_6 = arith.constant dense<0.000000e+00> : vector<32x256xf32>
    %6 = tpu.matmul %0, %5, %cst_6 {dimension_numbers = #tpu.dot_dimension_numbers<[1], [0], [0], [1], [0, 0, 1, 1], [], []>} : vector<32x144xbf16>, vector<144x256xbf16>, vector<32x256xf32> -> vector<32x256xf32>
    %7 = arith.maximumf %3, %6 : vector<32x256xf32>
    %c2 = arith.constant 2 : index
    %c0_7 = arith.constant 0 : index
    %c0_8 = arith.constant 0 : index
    %8 = vector.load %arg1[%c2, %c0_7, %c0_8] : memref<4x144x256xbf16, #tpu.memory_space<vmem>>, vector<1x144x256xbf16>
    %9 = vector.shape_cast %8 : vector<1x144x256xbf16> to vector<144x256xbf16>
    %cst_9 = arith.constant dense<0.000000e+00> : vector<32x256xf32>
    %10 = tpu.matmul %0, %9, %cst_9 {dimension_numbers = #tpu.dot_dimension_numbers<[1], [0], [0], [1], [0, 0, 1, 1], [], []>} : vector<32x144xbf16>, vector<144x256xbf16>, vector<32x256xf32> -> vector<32x256xf32>
    %11 = arith.maximumf %7, %10 : vector<32x256xf32>
    %c3 = arith.constant 3 : index
    %c0_10 = arith.constant 0 : index
    %c0_11 = arith.constant 0 : index
    %12 = vector.load %arg1[%c3, %c0_10, %c0_11] : memref<4x144x256xbf16, #tpu.memory_space<vmem>>, vector<1x144x256xbf16>
    %13 = vector.shape_cast %12 : vector<1x144x256xbf16> to vector<144x256xbf16>
    %cst_12 = arith.constant dense<0.000000e+00> : vector<32x256xf32>
    %14 = tpu.matmul %0, %13, %cst_12 {dimension_numbers = #tpu.dot_dimension_numbers<[1], [0], [0], [1], [0, 0, 1, 1], [], []>} : vector<32x144xbf16>, vector<144x256xbf16>, vector<32x256xf32> -> vector<32x256xf32>
    %15 = arith.maximumf %11, %14 : vector<32x256xf32>
    %c0_13 = arith.constant 0 : index
    %c0_14 = arith.constant 0 : index
    %16 = vector.load %arg3[%c0_13, %c0_14] : memref<32x1xf32, #tpu.memory_space<vmem>>, vector<32x1xf32>
    %17 = vector.broadcast %16 : vector<32x1xf32> to vector<32x256xf32>
    %18 = arith.addf %15, %17 : vector<32x256xf32>
    %cst_15 = arith.constant 0.000000e+00 : f32
    %19 = vector.broadcast %cst_15 : f32 to vector<32x256xf32>
    %20 = arith.maximumf %18, %19 : vector<32x256xf32>
    %21 = arith.truncf %20 : vector<32x256xf32> to vector<32x256xbf16>
    %c0_16 = arith.constant 0 : index
    %c0_17 = arith.constant 0 : index
    %22 = vector.load %arg4[%c0_16, %c0_17] : memref<32x256xbf16, #tpu.memory_space<vmem>>, vector<32x256xbf16>
    tpu.vector_store %arg4[%c0_16, %c0_17], %21 {strides = array<i32>} : memref<32x256xbf16, #tpu.memory_space<vmem>>, vector<32x256xbf16>,
    return
  }
  func.func @transform_0(%arg0: i32) -> (i32, i32, i32) {
    %c0_i32 = arith.constant 0 : i32
    %c0_i32_0 = arith.constant 0 : i32
    %c0_i32_1 = arith.constant 0 : i32
    return %c0_i32, %c0_i32_0, %arg0 : i32, i32, i32
  }
  func.func @transform_1(%arg0: i32) -> (i32, i32) {
    %c0_i32 = arith.constant 0 : i32
    %c0_i32_0 = arith.constant 0 : i32
    %c0_i32_1 = arith.constant 0 : i32
    return %c0_i32, %c0_i32_0 : i32, i32
  }
  func.func @transform_2(%arg0: i32) -> (i32, i32) {
    %c0_i32 = arith.constant 0 : i32
    %c0_i32_0 = arith.constant 0 : i32
    %c0_i32_1 = arith.constant 0 : i32
    return %c0_i32, %c0_i32_0 : i32, i32
  }
  func.func @transform_3(%arg0: i32) -> (i32, i32) {
    %c0_i32 = arith.constant 0 : i32
    %c0_i32_0 = arith.constant 0 : i32
    return %c0_i32, %arg0 : i32, i32
  }
}

module attributes {stable_mosaic.version = 11 : i64} {
  func.func @_conv_relu_pool_linear_kernel(%arg0: i32, %arg1: memref<4x288x128xbf16, #tpu.memory_space<vmem>>, %arg2: memref<16x288xbf16, #tpu.memory_space<vmem>>, %arg3: memref<16x1xf32, #tpu.memory_space<vmem>>, %arg4: memref<10x16xf32, #tpu.memory_space<vmem>>, %arg5: memref<10x1xf32, #tpu.memory_space<vmem>>, %arg6: memref<10x128xf32, #tpu.memory_space<vmem>>) attributes {dimension_semantics = [#tpu.dimension_semantics<parallel>], iteration_bounds = array<i64: 1>, scalar_prefetch = 0 : i64, scratch_operands = 0 : i64, tpu.core_type = #tpu.core_type<tc>, window_params = [{transform_indices = @transform_0, window_bounds = array<i64: 4, 288, 128>}, {pipeline_mode = #tpu.pipeline_mode<synchronous>, transform_indices = @transform_1, window_bounds = array<i64: 16, 288>}, {pipeline_mode = #tpu.pipeline_mode<synchronous>, transform_indices = @transform_2, window_bounds = array<i64: 16, 1>}, {pipeline_mode = #tpu.pipeline_mode<synchronous>, transform_indices = @transform_3, window_bounds = array<i64: 10, 16>}, {pipeline_mode = #tpu.pipeline_mode<synchronous>, transform_indices = @transform_4, window_bounds = array<i64: 10, 1>}, {transform_indices = @transform_5, window_bounds = array<i64: 10, 128>}]} {
    %c0 = arith.constant 0 : index
    %c0_0 = arith.constant 0 : index
    %0 = vector.load %arg2[%c0, %c0_0] : memref<16x288xbf16, #tpu.memory_space<vmem>>, vector<16x288xbf16>
    %c0_1 = arith.constant 0 : index
    %c0_2 = arith.constant 0 : index
    %c0_3 = arith.constant 0 : index
    %1 = vector.load %arg1[%c0_1, %c0_2, %c0_3] : memref<4x288x128xbf16, #tpu.memory_space<vmem>>, vector<1x288x128xbf16>
    %2 = vector.shape_cast %1 : vector<1x288x128xbf16> to vector<288x128xbf16>
    %cst = arith.constant dense<0.000000e+00> : vector<16x128xf32>
    %3 = tpu.matmul %0, %2, %cst {dimension_numbers = #tpu.dot_dimension_numbers<[1], [0], [0], [1], [0, 0, 1, 1], [], []>} : vector<16x288xbf16>, vector<288x128xbf16>, vector<16x128xf32> -> vector<16x128xf32>
    %c1 = arith.constant 1 : index
    %c0_4 = arith.constant 0 : index
    %c0_5 = arith.constant 0 : index
    %4 = vector.load %arg1[%c1, %c0_4, %c0_5] : memref<4x288x128xbf16, #tpu.memory_space<vmem>>, vector<1x288x128xbf16>
    %5 = vector.shape_cast %4 : vector<1x288x128xbf16> to vector<288x128xbf16>
    %cst_6 = arith.constant dense<0.000000e+00> : vector<16x128xf32>
    %6 = tpu.matmul %0, %5, %cst_6 {dimension_numbers = #tpu.dot_dimension_numbers<[1], [0], [0], [1], [0, 0, 1, 1], [], []>} : vector<16x288xbf16>, vector<288x128xbf16>, vector<16x128xf32> -> vector<16x128xf32>
    %7 = arith.maximumf %3, %6 : vector<16x128xf32>
    %c2 = arith.constant 2 : index
    %c0_7 = arith.constant 0 : index
    %c0_8 = arith.constant 0 : index
    %8 = vector.load %arg1[%c2, %c0_7, %c0_8] : memref<4x288x128xbf16, #tpu.memory_space<vmem>>, vector<1x288x128xbf16>
    %9 = vector.shape_cast %8 : vector<1x288x128xbf16> to vector<288x128xbf16>
    %cst_9 = arith.constant dense<0.000000e+00> : vector<16x128xf32>
    %10 = tpu.matmul %0, %9, %cst_9 {dimension_numbers = #tpu.dot_dimension_numbers<[1], [0], [0], [1], [0, 0, 1, 1], [], []>} : vector<16x288xbf16>, vector<288x128xbf16>, vector<16x128xf32> -> vector<16x128xf32>
    %11 = arith.maximumf %7, %10 : vector<16x128xf32>
    %c3 = arith.constant 3 : index
    %c0_10 = arith.constant 0 : index
    %c0_11 = arith.constant 0 : index
    %12 = vector.load %arg1[%c3, %c0_10, %c0_11] : memref<4x288x128xbf16, #tpu.memory_space<vmem>>, vector<1x288x128xbf16>
    %13 = vector.shape_cast %12 : vector<1x288x128xbf16> to vector<288x128xbf16>
    %cst_12 = arith.constant dense<0.000000e+00> : vector<16x128xf32>
    %14 = tpu.matmul %0, %13, %cst_12 {dimension_numbers = #tpu.dot_dimension_numbers<[1], [0], [0], [1], [0, 0, 1, 1], [], []>} : vector<16x288xbf16>, vector<288x128xbf16>, vector<16x128xf32> -> vector<16x128xf32>
    %15 = arith.maximumf %11, %14 : vector<16x128xf32>
    %c0_13 = arith.constant 0 : index
    %c0_14 = arith.constant 0 : index
    %16 = vector.load %arg3[%c0_13, %c0_14] : memref<16x1xf32, #tpu.memory_space<vmem>>, vector<16x1xf32>
    %17 = vector.broadcast %16 : vector<16x1xf32> to vector<16x128xf32>
    %18 = arith.addf %15, %17 : vector<16x128xf32>
    %cst_15 = arith.constant 0.000000e+00 : f32
    %19 = vector.broadcast %cst_15 : f32 to vector<16x128xf32>
    %20 = arith.maximumf %18, %19 : vector<16x128xf32>
    %c0_16 = arith.constant 0 : index
    %c0_17 = arith.constant 0 : index
    %21 = vector.load %arg4[%c0_16, %c0_17] : memref<10x16xf32, #tpu.memory_space<vmem>>, vector<10x16xf32>
    %cst_18 = arith.constant dense<0.000000e+00> : vector<10x128xf32>
    %22 = tpu.matmul %21, %20, %cst_18 {dimension_numbers = #tpu.dot_dimension_numbers<[1], [0], [0], [1], [0, 0, 1, 1], [], []>} : vector<10x16xf32>, vector<16x128xf32>, vector<10x128xf32> -> vector<10x128xf32>
    %c0_19 = arith.constant 0 : index
    %c0_20 = arith.constant 0 : index
    %23 = vector.load %arg5[%c0_19, %c0_20] : memref<10x1xf32, #tpu.memory_space<vmem>>, vector<10x1xf32>
    %24 = vector.broadcast %23 : vector<10x1xf32> to vector<10x128xf32>
    %25 = arith.addf %22, %24 : vector<10x128xf32>
    %c0_21 = arith.constant 0 : index
    %c0_22 = arith.constant 0 : index
    %26 = vector.load %arg6[%c0_21, %c0_22] : memref<10x128xf32, #tpu.memory_space<vmem>>, vector<10x128xf32>
    tpu.vector_store %arg6[%c0_21, %c0_22], %25 {strides = array<i32>} : memref<10x128xf32, #tpu.memory_space<vmem>>, vector<10x128xf32>,
    return
  }
  func.func @transform_0(%arg0: i32) -> (i32, i32, i32) {
    %c0_i32 = arith.constant 0 : i32
    %c0_i32_0 = arith.constant 0 : i32
    %c0_i32_1 = arith.constant 0 : i32
    return %c0_i32, %c0_i32_0, %arg0 : i32, i32, i32
  }
  func.func @transform_1(%arg0: i32) -> (i32, i32) {
    %c0_i32 = arith.constant 0 : i32
    %c0_i32_0 = arith.constant 0 : i32
    %c0_i32_1 = arith.constant 0 : i32
    return %c0_i32, %c0_i32_0 : i32, i32
  }
  func.func @transform_2(%arg0: i32) -> (i32, i32) {
    %c0_i32 = arith.constant 0 : i32
    %c0_i32_0 = arith.constant 0 : i32
    %c0_i32_1 = arith.constant 0 : i32
    return %c0_i32, %c0_i32_0 : i32, i32
  }
  func.func @transform_3(%arg0: i32) -> (i32, i32) {
    %c0_i32 = arith.constant 0 : i32
    %c0_i32_0 = arith.constant 0 : i32
    %c0_i32_1 = arith.constant 0 : i32
    return %c0_i32, %c0_i32_0 : i32, i32
  }
  func.func @transform_4(%arg0: i32) -> (i32, i32) {
    %c0_i32 = arith.constant 0 : i32
    %c0_i32_0 = arith.constant 0 : i32
    %c0_i32_1 = arith.constant 0 : i32
    return %c0_i32, %c0_i32_0 : i32, i32
  }
  func.func @transform_5(%arg0: i32) -> (i32, i32) {
    %c0_i32 = arith.constant 0 : i32
    %c0_i32_0 = arith.constant 0 : i32
    return %c0_i32, %arg0 : i32, i32
  }
}

</mosaic_0001>

<llo_original>
// kernel: mnist_cnn_forward.3
$region0: #{mnist_cnn_forward.3}
  #allocation0 [shape = 'u32[]', space=smem, size = 0x4, offset = 0x4, fixed_abs, tag = 'smem constant byte address 0x4 - core index']
  #allocation1 [shape = 'u32[144,128]{1,0:T(1,128)}', space=vmem, size = 0x12000, scoped, tag = 'internal scratch']
  %s0 = inlined_call_operand.vmem [shape: bf16[4,9,1536], index: 0, kind: input, shape index: {}]
  %s1 = inlined_call_operand.vmem [shape: bf16[16,9], index: 1, kind: input, shape index: {}]
  %s2 = inlined_call_operand.vmem [shape: f32[16,1], index: 2, kind: input, shape index: {}]
  %s3 = inlined_call_operand.vmem [shape: bf16[16,1536], index: 3, kind: output, shape index: {}]
  %s4 = sld [smem:[#allocation0]]
  $region87: #{mnist_cnn_forward.3} parent=0
    _
  %s6 = ssub.s32 1, %s4
  %s7 = scalar_select 0, %s6, %s4
  $region1: #{mnist_cnn_forward.3} parent=0
    #allocation2 [shape = 'u8[131072]{0}', space=vmem, size = 0x20000, scoped, tag = 'input window, operand 0']
    #allocation3 [shape = 'u8[32768]{0}', space=vmem, size = 0x8000, scoped, tag = 'output window, operand 0']
    loop: start=0, step=1, limit=5
    $region2: #{mnist_cnn_forward.3} parent=1 // loop_pre_header
      _
    $region3: #{mnist_cnn_forward.3} parent=1 // loop_header
      %s9 = sphi 0, %s13
      %p10 = scmp.ge.s32.totalorder %s9, 5
      %s19 = sphi 0, %s21
      %s22 = sphi 0, %s19
      %s23 = sphi 0, %s22
      %s39 = sphi 0, %s23
      %s43 = sphi 0, %s43
      %s45 = sphi 0, %s43
      %s46 = sphi 0, %s45
      %s60 = sphi 0, %s46
      %s64 = sphi 0, %s64
      %s66 = sphi 0, %s64
      %s67 = sphi 0, %s66
      %s81 = sphi 0, %s67
      %s87 = sphi 0, %s89
      %s90 = sphi 0, %s87
      %s91 = sphi 0, %s90
      %s107 = sphi 0, %s91
    $region4: #{mnist_cnn_forward.3} parent=1 // loop_header_branch
      %12 = sbr.rel (%p10) target = $region8
    $region5: #{mnist_cnn_forward.3} parent=1 // loop_body
      %s14 = ssub.s32 %s9, 1
      %s15 = ssub.s32 %s9, 2
      %s16 = sadd.s32 %s9, 1
      %s17 = ssub.s32 %s9, %s16
      %p18 = scmp.eq.s32.totalorder %s17, 0
      %s20 = sadd.s32 %s19, 1
      %s21 = scalar_select %p18, %s19, %s20
      %p24 = pneg %p18
      %p25 = scmp.eq.s32.totalorder %s9, 2
      %p26 = por %p24, %p25
      %p27 = scmp.ne.s32.totalorder %s19, %s22
      %p28 = scmp.eq.s32.totalorder %s9, 0
      %p29 = por %p27, %p28
      %p30 = scmp.ne.s32.totalorder %s19, %s22
      %p31 = scmp.eq.s32.totalorder %s14, 2
      %p32 = por %p30, %p31
      %p33 = scmp.ne.s32.totalorder %s22, %s23
      %p34 = scmp.eq.s32.totalorder %s14, 0
      %p35 = por %p33, %p34
      %p36 = scmp.ne.s32.totalorder %s22, %s23
      %p37 = scmp.eq.s32.totalorder %s15, 2
      %p38 = por %p36, %p37
      %p40 = scmp.ne.s32.totalorder %s23, %s39
      %p41 = scmp.eq.s32.totalorder %s15, 0
      %p42 = por %p40, %p41
      %s44 = sadd.s32 %s43, 1
      %p47 = scmp.eq.s32.totalorder %s9, 2
      %p48 = scmp.ne.s32.totalorder %s43, %s45
      %p49 = scmp.eq.s32.totalorder %s9, 0
      %p50 = por %p48, %p49
      %p51 = scmp.ne.s32.totalorder %s43, %s45
      %p52 = scmp.eq.s32.totalorder %s14, 2
      %p53 = por %p51, %p52
      %p54 = scmp.ne.s32.totalorder %s45, %s46
      %p55 = scmp.eq.s32.totalorder %s14, 0
      %p56 = por %p54, %p55
      %p57 = scmp.ne.s32.totalorder %s45, %s46
      %p58 = scmp.eq.s32.totalorder %s15, 2
      %p59 = por %p57, %p58
      %p61 = scmp.ne.s32.totalorder %s46, %s60
      %p62 = scmp.eq.s32.totalorder %s15, 0
      %p63 = por %p61, %p62
      %s65 = sadd.s32 %s64, 1
      %p68 = scmp.eq.s32.totalorder %s9, 2
      %p69 = scmp.ne.s32.totalorder %s64, %s66
      %p70 = scmp.eq.s32.totalorder %s9, 0
      %p71 = por %p69, %p70
      %p72 = scmp.ne.s32.totalorder %s64, %s66
      %p73 = scmp.eq.s32.totalorder %s14, 2
      %p74 = por %p72, %p73
      %p75 = scmp.ne.s32.totalorder %s66, %s67
      %p76 = scmp.eq.s32.totalorder %s14, 0
      %p77 = por %p75, %p76
      %p78 = scmp.ne.s32.totalorder %s66, %s67
      %p79 = scmp.eq.s32.totalorder %s15, 2
      %p80 = por %p78, %p79
      %p82 = scmp.ne.s32.totalorder %s67, %s81
      %p83 = scmp.eq.s32.totalorder %s15, 0
      %p84 = por %p82, %p83
      %s85 = ssub.s32 %s9, %s16
      %p86 = scmp.eq.s32.totalorder %s85, 0
      %s88 = sadd.s32 %s87, 1
      %s89 = scalar_select %p86, %s87, %s88
      %p92 = pneg %p86
      %p93 = scmp.eq.s32.totalorder %s9, 2
      %p94 = por %p92, %p93
      %p95 = scmp.ne.s32.totalorder %s87, %s90
      %p96 = scmp.eq.s32.totalorder %s9, 0
      %p97 = por %p95, %p96
      %p98 = scmp.ne.s32.totalorder %s87, %s90
      %p99 = scmp.eq.s32.totalorder %s14, 2
      %p100 = por %p98, %p99
      %p101 = scmp.ne.s32.totalorder %s90, %s91
      %p102 = scmp.eq.s32.totalorder %s14, 0
      %p103 = por %p101, %p102
      %p104 = scmp.ne.s32.totalorder %s90, %s91
      %p105 = scmp.eq.s32.totalorder %s15, 2
      %p106 = por %p104, %p105
      %p108 = scmp.ne.s32.totalorder %s91, %s107
      %p109 = scmp.eq.s32.totalorder %s15, 0
      %p110 = por %p108, %p109
      %p111 = scmp.le.s32.totalorder 1, %s9
      %p112 = scmp.lt.s32.totalorder %s9, 4
      %p113 = pnand %p111, %p112
      %p114 = pneg %p113
      // Predicated region
      $region9: #{mnist_cnn_forward.3} parent=5 // pred_check
        _
      $region10: #{mnist_cnn_forward.3} parent=5 // pred_check_branch
        %116 = sbr.rel (%p113) target = $region12
      $region11: #{mnist_cnn_forward.3} parent=5 // pred_region
        %s117 = ssub.s32 %s9, 1
        // Predicated region
        $region13: #{mnist_cnn_forward.3} parent=11 // pred_check
          %p118 = pneg %p56
        $region14: #{mnist_cnn_forward.3} parent=11 // pred_check_branch
          %120 = sbr.rel (%p118) target = $region16
        $region15: #{mnist_cnn_forward.3} parent=11 // pred_region
          _
        $region16: #{mnist_cnn_forward.3} parent=11 // pred_fallthru
          _
        // Predicated region
        $region17: #{mnist_cnn_forward.3} parent=11 // pred_check
          %p121 = pneg %p77
        $region18: #{mnist_cnn_forward.3} parent=11 // pred_check_branch
          %123 = sbr.rel (%p121) target = $region20
        $region19: #{mnist_cnn_forward.3} parent=11 // pred_region
          _
        $region20: #{mnist_cnn_forward.3} parent=11 // pred_fallthru
          _
      $region12: #{mnist_cnn_forward.3} parent=5 // pred_fallthru
        _
      %p124 = scmp.lt.s32.totalorder %s9, 3
      // Predicated region
      $region21: #{mnist_cnn_forward.3} parent=5 // pred_check
        %p125 = pneg %p124
      $region22: #{mnist_cnn_forward.3} parent=5 // pred_check_branch
        %127 = sbr.rel (%p125) target = $region24
      $region23: #{mnist_cnn_forward.3} parent=5 // pred_region
        // Predicated region
        $region25: #{mnist_cnn_forward.3} parent=23 // pred_check
          %p128 = pneg %p29
        $region26: #{mnist_cnn_forward.3} parent=23 // pred_check_branch
          %130 = sbr.rel (%p128) target = $region28
        $region27: #{mnist_cnn_forward.3} parent=23 // pred_region
          %s131 = sand.u32 %s19, 1
          %s132 = sand.u32 %s19, 1
          %s133 = smul.addr %s132, 128
          %s134 = scalar_lea.vmem [#allocation2], %s133
          %s135 = smul.u32 4, %s9
          %s136 = smul.addr %s135, 4
          %s137 = scalar_lea.vmem %s0, %s136
          // Predicated region
          $region29: #{mnist_cnn_forward.3} parent=27 // pred_check
            _
          $region30: #{mnist_cnn_forward.3} parent=27 // pred_check_branch
            %139 = sbr.rel (0) target = $region32
          $region31: #{mnist_cnn_forward.3} parent=27 // pred_region
            // Predicated region
            $region33: #{mnist_cnn_forward.3} parent=31 // pred_check
              _
            $region34: #{mnist_cnn_forward.3} parent=31 // pred_check_branch
              %141 = sbr.rel (0) target = $region36
            $region35: #{mnist_cnn_forward.3} parent=31 // pred_region
              loop: start=0, step=1, limit=1
              $region37: #{mnist_cnn_forward.3} parent=35 // loop_pre_header
                _
              $region38: #{mnist_cnn_forward.3} parent=35 // loop_header
                %s143 = sphi 0, %s147
                %p144 = scmp.ge.s32.totalorder %s143, 1
                %s148 = sphi %s137, %s137
                %s149 = sphi %s134, %s134
              $region39: #{mnist_cnn_forward.3} parent=35 // loop_header_branch
                %146 = sbr.rel (%p144) target = $region43
              $region40: #{mnist_cnn_forward.3} parent=35 // loop_body
                %v150 = vld [vmem:[%s148] sm:$0xff]
                %151 = vst [vmem:[%s149] sm:$0xff] %v150
                %v152 = vld [vmem:[%s148 + $0x8] sm:$0xff]
                %153 = vst [vmem:[%s149 + $0x8] sm:$0xff] %v152
                %v154 = vld [vmem:[%s148 + $0x30] sm:$0xff]
                %155 = vst [vmem:[%s149 + $0x10] sm:$0xff] %v154
                %v156 = vld [vmem:[%s148 + $0x38] sm:$0xff]
                %157 = vst [vmem:[%s149 + $0x18] sm:$0xff] %v156
                %v158 = vld [vmem:[%s148 + $0x60] sm:$0xff]
                %159 = vst [vmem:[%s149 + $0x20] sm:$0xff] %v158
                %v160 = vld [vmem:[%s148 + $0x68] sm:$0xff]
                %161 = vst [vmem:[%s149 + $0x28] sm:$0xff] %v160
                %v162 = vld [vmem:[%s148 + $0x90] sm:$0xff]
                %163 = vst [vmem:[%s149 + $0x30] sm:$0xff] %v162
                %v164 = vld [vmem:[%s148 + $0x98] sm:$0xff]
                %165 = vst [vmem:[%s149 + $0x38] sm:$0xff] %v164
                %v166 = vld [vmem:[%s148 + $0xc0] sm:$0xff]
                %167 = vst [vmem:[%s149 + $0x40] sm:$0xff] %v166
                %v168 = vld [vmem:[%s148 + $0xc8] sm:$0xff]
                %169 = vst [vmem:[%s149 + $0x48] sm:$0xff] %v168
                %v170 = vld [vmem:[%s148 + $0xf0] sm:$0xff]
                %171 = vst [vmem:[%s149 + $0x50] sm:$0xff] %v170
                %v172 = vld [vmem:[%s148 + $0xf8] sm:$0xff]
                %173 = vst [vmem:[%s149 + $0x58] sm:$0xff] %v172
                %v174 = vld [vmem:[%s148 + $0x120] sm:$0xff]
                %175 = vst [vmem:[%s149 + $0x60] sm:$0xff] %v174
                %v176 = vld [vmem:[%s148 + $0x128] sm:$0xff]
                %177 = vst [vmem:[%s149 + $0x68] sm:$0xff] %v176
                %v178 = vld [vmem:[%s148 + $0x150] sm:$0xff]
                %179 = vst [vmem:[%s149 + $0x70] sm:$0xff] %v178
                %v180 = vld [vmem:[%s148 + $0x158] sm:$0xff]
                %181 = vst [vmem:[%s149 + $0x78] sm:$0xff] %v180
              $region41: #{mnist_cnn_forward.3} parent=35 // loop_footer
                %s147 = sadd.s32 1, %s143
              $region42: #{mnist_cnn_forward.3} parent=35 // loop_footer_branch
                %142 = sbr.rel target = $region38
              $region43: #{mnist_cnn_forward.3} parent=35 // loop_exit
                _
            $region36: #{mnist_cnn_forward.3} parent=31 // pred_fallthru
              _
            // Predicated region
            $region44: #{mnist_cnn_forward.3} parent=31 // pred_check
              _
            $region45: #{mnist_cnn_forward.3} parent=31 // pred_check_branch
              %183 = sbr.rel target = $region47
            $region46: #{mnist_cnn_forward.3} parent=31 // pred_region
              _
            $region47: #{mnist_cnn_forward.3} parent=31 // pred_fallthru
              _
          $region32: #{mnist_cnn_forward.3} parent=27 // pred_fallthru
            _
          %184 = vnop
        $region28: #{mnist_cnn_forward.3} parent=23 // pred_fallthru
          _
      $region24: #{mnist_cnn_forward.3} parent=5 // pred_fallthru
        _
      %p185 = scmp.le.s32.totalorder 1, %s9
      %p186 = scmp.lt.s32.totalorder %s9, 4
      %p187 = pnand %p185, %p186
      %p188 = pneg %p187
      // Predicated region
      $region48: #{mnist_cnn_forward.3} parent=5 // pred_check
        _
      $region49: #{mnist_cnn_forward.3} parent=5 // pred_check_branch
        %190 = sbr.rel (%p187) target = $region51
      $region50: #{mnist_cnn_forward.3} parent=5 // pred_region
        %s191 = ssub.s32 %s9, 1
        %s192 = sand.u32 %s22, 1
        %s193 = sand.u32 %s22, 1
        %s194 = smul.addr %s193, 128
        %s195 = scalar_lea.vmem [#allocation2], %s194
        // Predicated region
        $region52: #{mnist_cnn_forward.3} parent=50 // pred_check
          %p196 = pneg %p35
        $region53: #{mnist_cnn_forward.3} parent=50 // pred_check_branch
          %198 = sbr.rel (%p196) target = $region55
        $region54: #{mnist_cnn_forward.3} parent=50 // pred_region
          _
        $region55: #{mnist_cnn_forward.3} parent=50 // pred_fallthru
          _
        %s199 = sand.u32 %s22, 1
        %s200 = sand.u32 %s22, 1
        %s201 = smul.addr %s200, 128
        %s202 = scalar_lea.vmem [#allocation2], %s201
        %p203 = pneg %p35
        %p204 = pneg %p32
        %p205 = pneg %p56
        %p206 = pneg %p53
        %p207 = pneg %p77
        %p208 = pneg %p74
        %p209 = pneg %p103
        %p210 = pneg %p100
        %s211 = sand.u32 %s90, 1
        %s212 = sand.u32 %s90, 1
        %s213 = smul.addr %s212, 32
        %s214 = scalar_lea.vmem [#allocation3], %s213
        %s215 = smul.u32 4, %s14
        %s216 = smul.u32 4, %s14
        %v218 = vld [vmem:[%s1] sm:$0xf]
        %v219 = vld [vmem:[%s1 + $0x4] sm:$0xf]
        %v220 = vld [vmem:[%s195] sm:$0xff]
        %v221 = vld [vmem:[%s195 + $0x8] sm:$0xff]
        %v222 = vld [vmem:[%s195 + $0x10] sm:$0x11]
        %v223 = vld [vmem:[%s195 + $0x18] sm:$0x11]
        %v226 = vunpack.c.l.b16 %v218
        %v227 = vunpack.c.l.b16 %v219
        %v228 = vpack.c.b16 %v227, %v226
        %v233 = vunpack.c.l.b16 %v220
        %v234 = vunpack.c.h.b16 %v220
        %v235 = vunpack.c.l.b16 %v221
        %v236 = vunpack.c.h.b16 %v221
        %v237 = vunpack.c.l.b16 %v222
        %v238 = vunpack.c.h.b16 %v222
        %v239 = vunpack.c.l.b16 %v223
        %v240 = vunpack.c.h.b16 %v223
        %v241 = vpack.c.b16 %v237, %v233
        %v242 = vpack.c.b16 %v238, %v234
        %v243 = vpack.c.b16 %v239, %v235
        %v244 = vpack.c.b16 %v240, %v236
        %vm245 = vcmask 72704
        %v247 = vsel %vm245, %v228, 0
        %vm249 = vcmask 1043456
        %vm250 = vcmask 1044480
        %v251 = vsel %vm249, 4294967295, 65535
        %v252 = vsel %vm250, %v251, 0
        %v254 = vand.u32 %v241, %v252
        %v257 = vand.u32 %v242, %v252
        %v260 = vand.u32 %v243, %v252
        %v263 = vand.u32 %v244, %v252
        %265 = vmatprep.subr.bf16.mxu0 0
        %266 = vmatpush1.bf16.msra.mxu0 0
        %267 = vmatprep.subr.bf16.mxu0 0
        %268 = vmatpush1.bf16.msra.mxu0 0
        %269 = vmatprep.subr.bf16.mxu0 0
        %270 = vmatpush1.bf16.msra.mxu0 0
        %271 = vmatprep.subr.bf16.mxu0 0
        %272 = vmatpush1.bf16.msra.mxu0 0
        %273 = vmatprep.subr.bf16.mxu0 0
        %274 = vmatpush1.bf16.msra.mxu0 0
        %275 = vmatprep.subr.bf16.mxu0 0
        %276 = vmatpush1.bf16.msra.mxu0 0
        %277 = vmatprep.subr.bf16.mxu0 0
        %278 = vmatpush1.bf16.msra.mxu0 0
        %279 = vmatprep.subr.bf16.mxu0 %v257
        %280 = vmatpush1.bf16.msra.mxu0 %v254
        %281 = vmatprep.subr.bf16.mxu0 0
        %282 = vmatpush2.bf16.msra.mxu0 0
        %283 = vmatprep.subr.bf16.mxu0 0
        %284 = vmatpush2.bf16.msra.mxu0 0
        %285 = vmatprep.subr.bf16.mxu0 0
        %286 = vmatpush2.bf16.msra.mxu0 0
        %287 = vmatprep.subr.bf16.mxu0 0
        %288 = vmatpush2.bf16.msra.mxu0 0
        %289 = vmatprep.subr.bf16.mxu0 0
        %290 = vmatpush2.bf16.msra.mxu0 0
        %291 = vmatprep.subr.bf16.mxu0 0
        %292 = vmatpush2.bf16.msra.mxu0 0
        %293 = vmatprep.subr.bf16.mxu0 0
        %294 = vmatpush2.bf16.msra.mxu0 0
        %295 = vmatprep.subr.bf16.mxu0 0
        %296 = vmatpush2.bf16.msra.mxu0 0
        %297 = vmatprep.mubr.bf16.mxu0 0
        %298 = vmatmul.mubr.bf16.gmra.mxu0 %v247
        %v299 = vpop.f32.mrf.mxu0
        %v300 = vadd.f32 0.0, %v299
        %v301 = vpop.f32.mrf.mxu0
        %v302 = vadd.f32 0.0, %v301
        %v303 = vpop.f32.mrf.mxu0
        %v304 = vadd.f32 0.0, %v303
        %v305 = vpop.f32.mrf.mxu0
        %v306 = vadd.f32 0.0, %v305
        %307 = vdwg.mxu0
        %308 = vmatprep.subr.bf16.mxu0 0
        %309 = vmatpush1.bf16.msra.mxu0 0
        %310 = vmatprep.subr.bf16.mxu0 0
        %311 = vmatpush1.bf16.msra.mxu0 0
        %312 = vmatprep.subr.bf16.mxu0 0
        %313 = vmatpush1.bf16.msra.mxu0 0
        %314 = vmatprep.subr.bf16.mxu0 0
        %315 = vmatpush1.bf16.msra.mxu0 0
        %316 = vmatprep.subr.bf16.mxu0 0
        %317 = vmatpush1.bf16.msra.mxu0 0
        %318 = vmatprep.subr.bf16.mxu0 0
        %319 = vmatpush1.bf16.msra.mxu0 0
        %320 = vmatprep.subr.bf16.mxu0 0
        %321 = vmatpush1.bf16.msra.mxu0 0
        %322 = vmatprep.subr.bf16.mxu0 %v263
        %323 = vmatpush1.bf16.msra.mxu0 %v260
        %324 = vmatprep.subr.bf16.mxu0 0
        %325 = vmatpush2.bf16.msra.mxu0 0
        %326 = vmatprep.subr.bf16.mxu0 0
        %327 = vmatpush2.bf16.msra.mxu0 0
        %328 = vmatprep.subr.bf16.mxu0 0
        %329 = vmatpush2.bf16.msra.mxu0 0
        %330 = vmatprep.subr.bf16.mxu0 0
        %331 = vmatpush2.bf16.msra.mxu0 0
        %332 = vmatprep.subr.bf16.mxu0 0
        %333 = vmatpush2.bf16.msra.mxu0 0
        %334 = vmatprep.subr.bf16.mxu0 0
        %335 = vmatpush2.bf16.msra.mxu0 0
        %336 = vmatprep.subr.bf16.mxu0 0
        %337 = vmatpush2.bf16.msra.mxu0 0
        %338 = vmatprep.subr.bf16.mxu0 0
        %339 = vmatpush2.bf16.msra.mxu0 0
        %340 = vmatprep.mubr.bf16.mxu0 0
        %341 = vmatmul.mubr.bf16.gmra.mxu0 %v247
        %v342 = vpop.f32.mrf.mxu0
        %v343 = vadd.f32 0.0, %v342
        %v344 = vpop.f32.mrf.mxu0
        %v345 = vadd.f32 0.0, %v344
        %v346 = vpop.f32.mrf.mxu0
        %v347 = vadd.f32 0.0, %v346
        %v348 = vpop.f32.mrf.mxu0
        %v349 = vadd.f32 0.0, %v348
        %350 = vdwg.mxu0
        %s351 = scalar_lea.vmem %s195, 32 [#allocation2]
        %v352 = vld [vmem:[%s351] sm:$0xff]
        %v353 = vld [vmem:[%s351 + $0x8] sm:$0xff]
        %v354 = vld [vmem:[%s351 + $0x10] sm:$0x11]
        %v355 = vld [vmem:[%s351 + $0x18] sm:$0x11]
        %v360 = vunpack.c.l.b16 %v352
        %v361 = vunpack.c.h.b16 %v352
        %v362 = vunpack.c.l.b16 %v353
        %v363 = vunpack.c.h.b16 %v353
        %v364 = vunpack.c.l.b16 %v354
        %v365 = vunpack.c.h.b16 %v354
        %v366 = vunpack.c.l.b16 %v355
        %v367 = vunpack.c.h.b16 %v355
        %v368 = vpack.c.b16 %v364, %v360
        %v369 = vpack.c.b16 %v365, %v361
        %v370 = vpack.c.b16 %v366, %v362
        %v371 = vpack.c.b16 %v367, %v363
        %v373 = vand.u32 %v368, %v252
        %v376 = vand.u32 %v369, %v252
        %v379 = vand.u32 %v370, %v252
        %v382 = vand.u32 %v371, %v252
        %384 = vmatprep.subr.bf16.mxu0 0
        %385 = vmatpush1.bf16.msra.mxu0 0
        %386 = vmatprep.subr.bf16.mxu0 0
        %387 = vmatpush1.bf16.msra.mxu0 0
        %388 = vmatprep.subr.bf16.mxu0 0
        %389 = vmatpush1.bf16.msra.mxu0 0
        %390 = vmatprep.subr.bf16.mxu0 0
        %391 = vmatpush1.bf16.msra.mxu0 0
        %392 = vmatprep.subr.bf16.mxu0 0
        %393 = vmatpush1.bf16.msra.mxu0 0
        %394 = vmatprep.subr.bf16.mxu0 0
        %395 = vmatpush1.bf16.msra.mxu0 0
        %396 = vmatprep.subr.bf16.mxu0 0
        %397 = vmatpush1.bf16.msra.mxu0 0
        %398 = vmatprep.subr.bf16.mxu0 %v376
        %399 = vmatpush1.bf16.msra.mxu0 %v373
        %400 = vmatprep.subr.bf16.mxu0 0
        %401 = vmatpush2.bf16.msra.mxu0 0
        %402 = vmatprep.subr.bf16.mxu0 0
        %403 = vmatpush2.bf16.msra.mxu0 0
        %404 = vmatprep.subr.bf16.mxu0 0
        %405 = vmatpush2.bf16.msra.mxu0 0
        %406 = vmatprep.subr.bf16.mxu0 0
        %407 = vmatpush2.bf16.msra.mxu0 0
        %408 = vmatprep.subr.bf16.mxu0 0
        %409 = vmatpush2.bf16.msra.mxu0 0
        %410 = vmatprep.subr.bf16.mxu0 0
        %411 = vmatpush2.bf16.msra.mxu0 0
        %412 = vmatprep.subr.bf16.mxu0 0
        %413 = vmatpush2.bf16.msra.mxu0 0
        %414 = vmatprep.subr.bf16.mxu0 0
        %415 = vmatpush2.bf16.msra.mxu0 0
        %416 = vmatprep.mubr.bf16.mxu0 0
        %417 = vmatmul.mubr.bf16.gmra.mxu0 %v247
        %v418 = vpop.f32.mrf.mxu0
        %v419 = vadd.f32 0.0, %v418
        %v420 = vpop.f32.mrf.mxu0
        %v421 = vadd.f32 0.0, %v420
        %v422 = vpop.f32.mrf.mxu0
        %v423 = vadd.f32 0.0, %v422
        %v424 = vpop.f32.mrf.mxu0
        %v425 = vadd.f32 0.0, %v424
        %426 = vdwg.mxu0
        %427 = vmatprep.subr.bf16.mxu0 0
        %428 = vmatpush1.bf16.msra.mxu0 0
        %429 = vmatprep.subr.bf16.mxu0 0
        %430 = vmatpush1.bf16.msra.mxu0 0
        %431 = vmatprep.subr.bf16.mxu0 0
        %432 = vmatpush1.bf16.msra.mxu0 0
        %433 = vmatprep.subr.bf16.mxu0 0
        %434 = vmatpush1.bf16.msra.mxu0 0
        %435 = vmatprep.subr.bf16.mxu0 0
        %436 = vmatpush1.bf16.msra.mxu0 0
        %437 = vmatprep.subr.bf16.mxu0 0
        %438 = vmatpush1.bf16.msra.mxu0 0
        %439 = vmatprep.subr.bf16.mxu0 0
        %440 = vmatpush1.bf16.msra.mxu0 0
        %441 = vmatprep.subr.bf16.mxu0 %v382
        %442 = vmatpush1.bf16.msra.mxu0 %v379
        %443 = vmatprep.subr.bf16.mxu0 0
        %444 = vmatpush2.bf16.msra.mxu0 0
        %445 = vmatprep.subr.bf16.mxu0 0
        %446 = vmatpush2.bf16.msra.mxu0 0
        %447 = vmatprep.subr.bf16.mxu0 0
        %448 = vmatpush2.bf16.msra.mxu0 0
        %449 = vmatprep.subr.bf16.mxu0 0
        %450 = vmatpush2.bf16.msra.mxu0 0
        %451 = vmatprep.subr.bf16.mxu0 0
        %452 = vmatpush2.bf16.msra.mxu0 0
        %453 = vmatprep.subr.bf16.mxu0 0
        %454 = vmatpush2.bf16.msra.mxu0 0
        %455 = vmatprep.subr.bf16.mxu0 0
        %456 = vmatpush2.bf16.msra.mxu0 0
        %457 = vmatprep.subr.bf16.mxu0 0
        %458 = vmatpush2.bf16.msra.mxu0 0
        %459 = vmatprep.mubr.bf16.mxu0 0
        %460 = vmatmul.mubr.bf16.gmra.mxu0 %v247
        %v461 = vpop.f32.mrf.mxu0
        %v462 = vadd.f32 0.0, %v461
        %v463 = vpop.f32.mrf.mxu0
        %v464 = vadd.f32 0.0, %v463
        %v465 = vpop.f32.mrf.mxu0
        %v466 = vadd.f32 0.0, %v465
        %v467 = vpop.f32.mrf.mxu0
        %v468 = vadd.f32 0.0, %v467
        %469 = vdwg.mxu0
        %v470 = vmax.f32 %v300, %v419
        %v471 = vmax.f32 %v302, %v421
        %v472 = vmax.f32 %v343, %v462
        %v473 = vmax.f32 %v345, %v464
        %v474 = vmax.f32 %v304, %v423
        %v475 = vmax.f32 %v306, %v425
        %v476 = vmax.f32 %v347, %v466
        %v477 = vmax.f32 %v349, %v468
        %s478 = scalar_lea.vmem %s195, 64 [#allocation2]
        %v479 = vld [vmem:[%s478] sm:$0xff]
        %v480 = vld [vmem:[%s478 + $0x8] sm:$0xff]
        %v481 = vld [vmem:[%s478 + $0x10] sm:$0x11]
        %v482 = vld [vmem:[%s478 + $0x18] sm:$0x11]
        %v487 = vunpack.c.l.b16 %v479
        %v488 = vunpack.c.h.b16 %v479
        %v489 = vunpack.c.l.b16 %v480
        %v490 = vunpack.c.h.b16 %v480
        %v491 = vunpack.c.l.b16 %v481
        %v492 = vunpack.c.h.b16 %v481
        %v493 = vunpack.c.l.b16 %v482
        %v494 = vunpack.c.h.b16 %v482
        %v495 = vpack.c.b16 %v491, %v487
        %v496 = vpack.c.b16 %v492, %v488
        %v497 = vpack.c.b16 %v493, %v489
        %v498 = vpack.c.b16 %v494, %v490
        %v500 = vand.u32 %v495, %v252
        %v503 = vand.u32 %v496, %v252
        %v506 = vand.u32 %v497, %v252
        %v509 = vand.u32 %v498, %v252
        %511 = vmatprep.subr.bf16.mxu0 0
        %512 = vmatpush1.bf16.msra.mxu0 0
        %513 = vmatprep.subr.bf16.mxu0 0
        %514 = vmatpush1.bf16.msra.mxu0 0
        %515 = vmatprep.subr.bf16.mxu0 0
        %516 = vmatpush1.bf16.msra.mxu0 0
        %517 = vmatprep.subr.bf16.mxu0 0
        %518 = vmatpush1.bf16.msra.mxu0 0
        %519 = vmatprep.subr.bf16.mxu0 0
        %520 = vmatpush1.bf16.msra.mxu0 0
        %521 = vmatprep.subr.bf16.mxu0 0
        %522 = vmatpush1.bf16.msra.mxu0 0
        %523 = vmatprep.subr.bf16.mxu0 0
        %524 = vmatpush1.bf16.msra.mxu0 0
        %525 = vmatprep.subr.bf16.mxu0 %v503
        %526 = vmatpush1.bf16.msra.mxu0 %v500
        %527 = vmatprep.subr.bf16.mxu0 0
        %528 = vmatpush2.bf16.msra.mxu0 0
        %529 = vmatprep.subr.bf16.mxu0 0
        %530 = vmatpush2.bf16.msra.mxu0 0
        %531 = vmatprep.subr.bf16.mxu0 0
        %532 = vmatpush2.bf16.msra.mxu0 0
        %533 = vmatprep.subr.bf16.mxu0 0
        %534 = vmatpush2.bf16.msra.mxu0 0
        %535 = vmatprep.subr.bf16.mxu0 0
        %536 = vmatpush2.bf16.msra.mxu0 0
        %537 = vmatprep.subr.bf16.mxu0 0
        %538 = vmatpush2.bf16.msra.mxu0 0
        %539 = vmatprep.subr.bf16.mxu0 0
        %540 = vmatpush2.bf16.msra.mxu0 0
        %541 = vmatprep.subr.bf16.mxu0 0
        %542 = vmatpush2.bf16.msra.mxu0 0
        %543 = vmatprep.mubr.bf16.mxu0 0
        %544 = vmatmul.mubr.bf16.gmra.mxu0 %v247
        %v545 = vpop.f32.mrf.mxu0
        %v546 = vadd.f32 0.0, %v545
        %v547 = vpop.f32.mrf.mxu0
        %v548 = vadd.f32 0.0, %v547
        %v549 = vpop.f32.mrf.mxu0
        %v550 = vadd.f32 0.0, %v549
        %v551 = vpop.f32.mrf.mxu0
        %v552 = vadd.f32 0.0, %v551
        %553 = vdwg.mxu0
        %554 = vmatprep.subr.bf16.mxu0 0
        %555 = vmatpush1.bf16.msra.mxu0 0
        %556 = vmatprep.subr.bf16.mxu0 0
        %557 = vmatpush1.bf16.msra.mxu0 0
        %558 = vmatprep.subr.bf16.mxu0 0
        %559 = vmatpush1.bf16.msra.mxu0 0
        %560 = vmatprep.subr.bf16.mxu0 0
        %561 = vmatpush1.bf16.msra.mxu0 0
        %562 = vmatprep.subr.bf16.mxu0 0
        %563 = vmatpush1.bf16.msra.mxu0 0
        %564 = vmatprep.subr.bf16.mxu0 0
        %565 = vmatpush1.bf16.msra.mxu0 0
        %566 = vmatprep.subr.bf16.mxu0 0
        %567 = vmatpush1.bf16.msra.mxu0 0
        %568 = vmatprep.subr.bf16.mxu0 %v509
        %569 = vmatpush1.bf16.msra.mxu0 %v506
        %570 = vmatprep.subr.bf16.mxu0 0
        %571 = vmatpush2.bf16.msra.mxu0 0
        %572 = vmatprep.subr.bf16.mxu0 0
        %573 = vmatpush2.bf16.msra.mxu0 0
        %574 = vmatprep.subr.bf16.mxu0 0
        %575 = vmatpush2.bf16.msra.mxu0 0
        %576 = vmatprep.subr.bf16.mxu0 0
        %577 = vmatpush2.bf16.msra.mxu0 0
        %578 = vmatprep.subr.bf16.mxu0 0
        %579 = vmatpush2.bf16.msra.mxu0 0
        %580 = vmatprep.subr.bf16.mxu0 0
        %581 = vmatpush2.bf16.msra.mxu0 0
        %582 = vmatprep.subr.bf16.mxu0 0
        %583 = vmatpush2.bf16.msra.mxu0 0
        %584 = vmatprep.subr.bf16.mxu0 0
        %585 = vmatpush2.bf16.msra.mxu0 0
        %586 = vmatprep.mubr.bf16.mxu0 0
        %587 = vmatmul.mubr.bf16.gmra.mxu0 %v247
        %v588 = vpop.f32.mrf.mxu0
        %v589 = vadd.f32 0.0, %v588
        %v590 = vpop.f32.mrf.mxu0
        %v591 = vadd.f32 0.0, %v590
        %v592 = vpop.f32.mrf.mxu0
        %v593 = vadd.f32 0.0, %v592
        %v594 = vpop.f32.mrf.mxu0
        %v595 = vadd.f32 0.0, %v594
        %596 = vdwg.mxu0
        %v597 = vmax.f32 %v470, %v546
        %v598 = vmax.f32 %v471, %v548
        %v599 = vmax.f32 %v472, %v589
        %v600 = vmax.f32 %v473, %v591
        %v601 = vmax.f32 %v474, %v550
        %v602 = vmax.f32 %v475, %v552
        %v603 = vmax.f32 %v476, %v593
        %v604 = vmax.f32 %v477, %v595
        %s605 = scalar_lea.vmem %s195, 96 [#allocation2]
        %v606 = vld [vmem:[%s605] sm:$0xff]
        %v607 = vld [vmem:[%s605 + $0x8] sm:$0xff]
        %v608 = vld [vmem:[%s605 + $0x10] sm:$0x11]
        %v609 = vld [vmem:[%s605 + $0x18] sm:$0x11]
        %v614 = vunpack.c.l.b16 %v606
        %v615 = vunpack.c.h.b16 %v606
        %v616 = vunpack.c.l.b16 %v607
        %v617 = vunpack.c.h.b16 %v607
        %v618 = vunpack.c.l.b16 %v608
        %v619 = vunpack.c.h.b16 %v608
        %v620 = vunpack.c.l.b16 %v609
        %v621 = vunpack.c.h.b16 %v609
        %v622 = vpack.c.b16 %v618, %v614
        %v623 = vpack.c.b16 %v619, %v615
        %v624 = vpack.c.b16 %v620, %v616
        %v625 = vpack.c.b16 %v621, %v617
        %v627 = vand.u32 %v622, %v252
        %v630 = vand.u32 %v623, %v252
        %v633 = vand.u32 %v624, %v252
        %v636 = vand.u32 %v625, %v252
        %638 = vmatprep.subr.bf16.mxu0 0
        %639 = vmatpush1.bf16.msra.mxu0 0
        %640 = vmatprep.subr.bf16.mxu0 0
        %641 = vmatpush1.bf16.msra.mxu0 0
        %642 = vmatprep.subr.bf16.mxu0 0
        %643 = vmatpush1.bf16.msra.mxu0 0
        %644 = vmatprep.subr.bf16.mxu0 0
        %645 = vmatpush1.bf16.msra.mxu0 0
        %646 = vmatprep.subr.bf16.mxu0 0
        %647 = vmatpush1.bf16.msra.mxu0 0
        %648 = vmatprep.subr.bf16.mxu0 0
        %649 = vmatpush1.bf16.msra.mxu0 0
        %650 = vmatprep.subr.bf16.mxu0 0
        %651 = vmatpush1.bf16.msra.mxu0 0
        %652 = vmatprep.subr.bf16.mxu0 %v630
        %653 = vmatpush1.bf16.msra.mxu0 %v627
        %654 = vmatprep.subr.bf16.mxu0 0
        %655 = vmatpush2.bf16.msra.mxu0 0
        %656 = vmatprep.subr.bf16.mxu0 0
        %657 = vmatpush2.bf16.msra.mxu0 0
        %658 = vmatprep.subr.bf16.mxu0 0
        %659 = vmatpush2.bf16.msra.mxu0 0
        %660 = vmatprep.subr.bf16.mxu0 0
        %661 = vmatpush2.bf16.msra.mxu0 0
        %662 = vmatprep.subr.bf16.mxu0 0
        %663 = vmatpush2.bf16.msra.mxu0 0
        %664 = vmatprep.subr.bf16.mxu0 0
        %665 = vmatpush2.bf16.msra.mxu0 0
        %666 = vmatprep.subr.bf16.mxu0 0
        %667 = vmatpush2.bf16.msra.mxu0 0
        %668 = vmatprep.subr.bf16.mxu0 0
        %669 = vmatpush2.bf16.msra.mxu0 0
        %670 = vmatprep.mubr.bf16.mxu0 0
        %671 = vmatmul.mubr.bf16.gmra.mxu0 %v247
        %v672 = vpop.f32.mrf.mxu0
        %v673 = vadd.f32 0.0, %v672
        %v674 = vpop.f32.mrf.mxu0
        %v675 = vadd.f32 0.0, %v674
        %v676 = vpop.f32.mrf.mxu0
        %v677 = vadd.f32 0.0, %v676
        %v678 = vpop.f32.mrf.mxu0
        %v679 = vadd.f32 0.0, %v678
        %680 = vdwg.mxu0
        %681 = vmatprep.subr.bf16.mxu0 0
        %682 = vmatpush1.bf16.msra.mxu0 0
        %683 = vmatprep.subr.bf16.mxu0 0
        %684 = vmatpush1.bf16.msra.mxu0 0
        %685 = vmatprep.subr.bf16.mxu0 0
        %686 = vmatpush1.bf16.msra.mxu0 0
        %687 = vmatprep.subr.bf16.mxu0 0
        %688 = vmatpush1.bf16.msra.mxu0 0
        %689 = vmatprep.subr.bf16.mxu0 0
        %690 = vmatpush1.bf16.msra.mxu0 0
        %691 = vmatprep.subr.bf16.mxu0 0
        %692 = vmatpush1.bf16.msra.mxu0 0
        %693 = vmatprep.subr.bf16.mxu0 0
        %694 = vmatpush1.bf16.msra.mxu0 0
        %695 = vmatprep.subr.bf16.mxu0 %v636
        %696 = vmatpush1.bf16.msra.mxu0 %v633
        %697 = vmatprep.subr.bf16.mxu0 0
        %698 = vmatpush2.bf16.msra.mxu0 0
        %699 = vmatprep.subr.bf16.mxu0 0
        %700 = vmatpush2.bf16.msra.mxu0 0
        %701 = vmatprep.subr.bf16.mxu0 0
        %702 = vmatpush2.bf16.msra.mxu0 0
        %703 = vmatprep.subr.bf16.mxu0 0
        %704 = vmatpush2.bf16.msra.mxu0 0
        %705 = vmatprep.subr.bf16.mxu0 0
        %706 = vmatpush2.bf16.msra.mxu0 0
        %707 = vmatprep.subr.bf16.mxu0 0
        %708 = vmatpush2.bf16.msra.mxu0 0
        %709 = vmatprep.subr.bf16.mxu0 0
        %710 = vmatpush2.bf16.msra.mxu0 0
        %711 = vmatprep.subr.bf16.mxu0 0
        %712 = vmatpush2.bf16.msra.mxu0 0
        %713 = vmatprep.mubr.bf16.mxu0 0
        %714 = vmatmul.mubr.bf16.gmra.mxu0 %v247
        %v715 = vpop.f32.mrf.mxu0
        %v716 = vadd.f32 0.0, %v715
        %v717 = vpop.f32.mrf.mxu0
        %v718 = vadd.f32 0.0, %v717
        %v719 = vpop.f32.mrf.mxu0
        %v720 = vadd.f32 0.0, %v719
        %v721 = vpop.f32.mrf.mxu0
        %v722 = vadd.f32 0.0, %v721
        %723 = vdwg.mxu0
        %v724 = vmax.f32 %v597, %v673
        %v725 = vmax.f32 %v598, %v675
        %v726 = vmax.f32 %v599, %v716
        %v727 = vmax.f32 %v600, %v718
        %v728 = vmax.f32 %v601, %v677
        %v729 = vmax.f32 %v602, %v679
        %v730 = vmax.f32 %v603, %v720
        %v731 = vmax.f32 %v604, %v722
        %v732 = vld [vmem:[%s2] sm:$0xff]
        %v733 = vld [vmem:[%s2 + $0x8] sm:$0xff]
        %735 = vset.pattern.permute.xlu0 0
        %736 = vperm.xlu0 %735, %v732
        %v737 = vpop.permute.xlu0 %736
        %740 = vset.pattern.permute.xlu0 0
        %741 = vperm.xlu0 %740, %v733
        %v742 = vpop.permute.xlu0 %741
        %v744 = vadd.f32 %v724, %v737
        %v745 = vadd.f32 %v725, %v737
        %v746 = vadd.f32 %v726, %v737
        %v747 = vadd.f32 %v727, %v737
        %v748 = vadd.f32 %v728, %v742
        %v749 = vadd.f32 %v729, %v742
        %v750 = vadd.f32 %v730, %v742
        %v751 = vadd.f32 %v731, %v742
        %v752 = vmax.f32 %v744, 0.0
        %v753 = vmax.f32 %v745, 0.0
        %v754 = vmax.f32 %v746, 0.0
        %v755 = vmax.f32 %v747, 0.0
        %v756 = vmax.f32 %v748, 0.0
        %v757 = vmax.f32 %v749, 0.0
        %v758 = vmax.f32 %v750, 0.0
        %v759 = vmax.f32 %v751, 0.0
        %v760 = vpack.c.bf16 %v756, %v752
        %v761 = vpack.c.bf16 %v757, %v753
        %v762 = vpack.c.bf16 %v758, %v754
        %v763 = vpack.c.bf16 %v759, %v755
        %v768 = vunpack.c.l.b16 %v760
        %v769 = vunpack.c.l.b16 %v761
        %v770 = vunpack.c.l.b16 %v762
        %v771 = vunpack.c.l.b16 %v763
        %v772 = vunpack.c.h.b16 %v760
        %v773 = vunpack.c.h.b16 %v761
        %v774 = vunpack.c.h.b16 %v762
        %v775 = vunpack.c.h.b16 %v763
        %v776 = vpack.c.b16 %v769, %v768
        %v777 = vpack.c.b16 %v771, %v770
        %v778 = vpack.c.b16 %v773, %v772
        %v779 = vpack.c.b16 %v775, %v774
        %784 = vst [vmem:[%s214] sm:$0xff] %v776
        %785 = vst [vmem:[%s214 + $0x8] sm:$0xff] %v777
        %786 = vst [vmem:[%s214 + $0x10] sm:$0xff] %v778
        %787 = vst [vmem:[%s214 + $0x18] sm:$0xff] %v779
        %s788 = sand.u32 %s90, 1
        %s789 = sand.u32 %s90, 1
        %s790 = smul.addr %s789, 32
        %s791 = scalar_lea.vmem [#allocation3], %s790
        // Predicated region
        $region56: #{mnist_cnn_forward.3} parent=50 // pred_check
          %p792 = pneg %p100
        $region57: #{mnist_cnn_forward.3} parent=50 // pred_check_branch
          %794 = sbr.rel (%p792) target = $region59
        $region58: #{mnist_cnn_forward.3} parent=50 // pred_region
          %s795 = smul.u32 4, %s14
          %s796 = smul.addr %s795, 4
          %s797 = scalar_lea.vmem %s3, %s796
          // Predicated region
          $region60: #{mnist_cnn_forward.3} parent=58 // pred_check
            _
          $region61: #{mnist_cnn_forward.3} parent=58 // pred_check_branch
            %799 = sbr.rel (0) target = $region63
          $region62: #{mnist_cnn_forward.3} parent=58 // pred_region
            // Predicated region
            $region64: #{mnist_cnn_forward.3} parent=62 // pred_check
              _
            $region65: #{mnist_cnn_forward.3} parent=62 // pred_check_branch
              %801 = sbr.rel (0) target = $region67
            $region66: #{mnist_cnn_forward.3} parent=62 // pred_region
              loop: start=0, step=1, limit=1
              $region68: #{mnist_cnn_forward.3} parent=66 // loop_pre_header
                _
              $region69: #{mnist_cnn_forward.3} parent=66 // loop_header
                %s803 = sphi 0, %s807
                %p804 = scmp.ge.s32.totalorder %s803, 1
                %s808 = sphi %s791, %s791
                %s809 = sphi %s797, %s797
              $region70: #{mnist_cnn_forward.3} parent=66 // loop_header_branch
                %806 = sbr.rel (%p804) target = $region74
              $region71: #{mnist_cnn_forward.3} parent=66 // loop_body
                %v810 = vld [vmem:[%s808] sm:$0xff]
                %811 = vst [vmem:[%s809] sm:$0xff] %v810
                %v812 = vld [vmem:[%s808 + $0x8] sm:$0xff]
                %813 = vst [vmem:[%s809 + $0x8] sm:$0xff] %v812
                %v814 = vld [vmem:[%s808 + $0x10] sm:$0xff]
                %815 = vst [vmem:[%s809 + $0x30] sm:$0xff] %v814
                %v816 = vld [vmem:[%s808 + $0x18] sm:$0xff]
                %817 = vst [vmem:[%s809 + $0x38] sm:$0xff] %v816
              $region72: #{mnist_cnn_forward.3} parent=66 // loop_footer
                %s807 = sadd.s32 1, %s803
              $region73: #{mnist_cnn_forward.3} parent=66 // loop_footer_branch
                %802 = sbr.rel target = $region69
              $region74: #{mnist_cnn_forward.3} parent=66 // loop_exit
                _
            $region67: #{mnist_cnn_forward.3} parent=62 // pred_fallthru
              _
            // Predicated region
            $region75: #{mnist_cnn_forward.3} parent=62 // pred_check
              _
            $region76: #{mnist_cnn_forward.3} parent=62 // pred_check_branch
              %819 = sbr.rel target = $region78
            $region77: #{mnist_cnn_forward.3} parent=62 // pred_region
              _
            $region78: #{mnist_cnn_forward.3} parent=62 // pred_fallthru
              _
          $region63: #{mnist_cnn_forward.3} parent=58 // pred_fallthru
            _
          %820 = vnop
        $region59: #{mnist_cnn_forward.3} parent=50 // pred_fallthru
          _
      $region51: #{mnist_cnn_forward.3} parent=5 // pred_fallthru
        _
      %p821 = scmp.le.s32.totalorder 2, %s9
      // Predicated region
      $region79: #{mnist_cnn_forward.3} parent=5 // pred_check
        %p822 = pneg %p821
      $region80: #{mnist_cnn_forward.3} parent=5 // pred_check_branch
        %824 = sbr.rel (%p822) target = $region82
      $region81: #{mnist_cnn_forward.3} parent=5 // pred_region
        %s825 = ssub.s32 %s9, 2
        // Predicated region
        $region83: #{mnist_cnn_forward.3} parent=81 // pred_check
          %p826 = pneg %p106
        $region84: #{mnist_cnn_forward.3} parent=81 // pred_check_branch
          %828 = sbr.rel (%p826) target = $region86
        $region85: #{mnist_cnn_forward.3} parent=81 // pred_region
          %s829 = sand.u32 %s91, 1
          %s830 = sand.u32 %s91, 1
          %s831 = smul.addr %s830, 32
          %s832 = scalar_lea.vmem [#allocation3], %s831
        $region86: #{mnist_cnn_forward.3} parent=81 // pred_fallthru
          _
      $region82: #{mnist_cnn_forward.3} parent=5 // pred_fallthru
        _
    $region6: #{mnist_cnn_forward.3} parent=1 // loop_footer
      %s13 = sadd.s32 1, %s9
    $region7: #{mnist_cnn_forward.3} parent=1 // loop_footer_branch
      %8 = sbr.rel target = $region3
    $region8: #{mnist_cnn_forward.3} parent=1 // loop_exit
      _

// kernel: mnist_cnn_forward.4
$region0: #{mnist_cnn_forward.4}
  #allocation0 [shape = 'u32[]', space=smem, size = 0x4, offset = 0x4, fixed_abs, tag = 'smem constant byte address 0x4 - core index']
  #allocation1 [shape = 'u32[144,128]{1,0:T(1,128)}', space=vmem, size = 0x12000, scoped, tag = 'internal scratch']
  %s0 = inlined_call_operand.vmem [shape: bf16[4,144,256], index: 0, kind: input, shape index: {}]
  %s1 = inlined_call_operand.vmem [shape: bf16[32,144], index: 1, kind: input, shape index: {}]
  %s2 = inlined_call_operand.vmem [shape: f32[32,1], index: 2, kind: input, shape index: {}]
  %s3 = inlined_call_operand.vmem [shape: bf16[32,256], index: 3, kind: output, shape index: {}]
  %s4 = sld [smem:[#allocation0]]
  $region22: #{mnist_cnn_forward.4} parent=0
    _
  %s6 = ssub.s32 1, %s4
  %s7 = scalar_select 0, %s6, %s4
  // Predicated region
  $region2: #{mnist_cnn_forward.4} parent=0 // pred_check
    _
  $region3: #{mnist_cnn_forward.4} parent=0 // pred_check_branch
    %9 = sbr.rel (0) target = $region5
  $region4: #{mnist_cnn_forward.4} parent=0 // pred_region
    _
  $region5: #{mnist_cnn_forward.4} parent=0 // pred_fallthru
    _
  // Predicated region
  $region6: #{mnist_cnn_forward.4} parent=0 // pred_check
    _
  $region7: #{mnist_cnn_forward.4} parent=0 // pred_check_branch
    %11 = sbr.rel (0) target = $region9
  $region8: #{mnist_cnn_forward.4} parent=0 // pred_region
    _
  $region9: #{mnist_cnn_forward.4} parent=0 // pred_fallthru
    _
  // Predicated region
  $region10: #{mnist_cnn_forward.4} parent=0 // pred_check
    _
  $region11: #{mnist_cnn_forward.4} parent=0 // pred_check_branch
    %13 = sbr.rel (0) target = $region13
  $region12: #{mnist_cnn_forward.4} parent=0 // pred_region
    _
  $region13: #{mnist_cnn_forward.4} parent=0 // pred_fallthru
    _
  %v15 = vld [vmem:[%s1] sm:$0xff]
  %v16 = vld [vmem:[%s1 + $0x8] sm:$0xff]
  %v17 = vld [vmem:[%s1 + $0x10] sm:$0xff]
  %v18 = vld [vmem:[%s1 + $0x18] sm:$0xff]
  %v19 = vld [vmem:[%s0] sm:$0xff]
  %v20 = vld [vmem:[%s0 + $0x8] sm:$0xff]
  %v21 = vld [vmem:[%s0 + $0x10] sm:$0xff]
  %v22 = vld [vmem:[%s0 + $0x18] sm:$0xff]
  %v23 = vld [vmem:[%s0 + $0x20] sm:$0xff]
  %v24 = vld [vmem:[%s0 + $0x28] sm:$0xff]
  %v25 = vld [vmem:[%s0 + $0x30] sm:$0xff]
  %v26 = vld [vmem:[%s0 + $0x38] sm:$0xff]
  %v27 = vld [vmem:[%s0 + $0x40] sm:$0xff]
  %v28 = vld [vmem:[%s0 + $0x48] sm:$0xff]
  %v29 = vld [vmem:[%s0 + $0x50] sm:$0xff]
  %v30 = vld [vmem:[%s0 + $0x58] sm:$0xff]
  %v31 = vld [vmem:[%s0 + $0x60] sm:$0xff]
  %v32 = vld [vmem:[%s0 + $0x68] sm:$0xff]
  %v33 = vld [vmem:[%s0 + $0x70] sm:$0xff]
  %v34 = vld [vmem:[%s0 + $0x78] sm:$0xff]
  %v35 = vld [vmem:[%s0 + $0x80] sm:$0xff]
  %v36 = vld [vmem:[%s0 + $0x88] sm:$0xff]
  %v41 = vunpack.c.l.b16 %v15
  %v42 = vunpack.c.h.b16 %v15
  %v43 = vunpack.c.l.b16 %v16
  %v44 = vunpack.c.h.b16 %v16
  %v45 = vunpack.c.l.b16 %v17
  %v46 = vunpack.c.h.b16 %v17
  %v47 = vunpack.c.l.b16 %v18
  %v48 = vunpack.c.h.b16 %v18
  %v49 = vpack.c.b16 %v43, %v41
  %v50 = vpack.c.b16 %v44, %v42
  %v51 = vpack.c.b16 %v47, %v45
  %v52 = vpack.c.b16 %v48, %v46
  %v73 = vunpack.c.l.b16 %v19
  %v74 = vunpack.c.h.b16 %v19
  %v75 = vunpack.c.l.b16 %v20
  %v76 = vunpack.c.h.b16 %v20
  %v77 = vunpack.c.l.b16 %v21
  %v78 = vunpack.c.h.b16 %v21
  %v79 = vunpack.c.l.b16 %v22
  %v80 = vunpack.c.h.b16 %v22
  %v81 = vunpack.c.l.b16 %v23
  %v82 = vunpack.c.h.b16 %v23
  %v83 = vunpack.c.l.b16 %v24
  %v84 = vunpack.c.h.b16 %v24
  %v85 = vunpack.c.l.b16 %v25
  %v86 = vunpack.c.h.b16 %v25
  %v87 = vunpack.c.l.b16 %v26
  %v88 = vunpack.c.h.b16 %v26
  %v89 = vunpack.c.l.b16 %v27
  %v90 = vunpack.c.h.b16 %v27
  %v91 = vunpack.c.l.b16 %v28
  %v92 = vunpack.c.h.b16 %v28
  %v93 = vunpack.c.l.b16 %v29
  %v94 = vunpack.c.h.b16 %v29
  %v95 = vunpack.c.l.b16 %v30
  %v96 = vunpack.c.h.b16 %v30
  %v97 = vunpack.c.l.b16 %v31
  %v98 = vunpack.c.h.b16 %v31
  %v99 = vunpack.c.l.b16 %v32
  %v100 = vunpack.c.h.b16 %v32
  %v101 = vunpack.c.l.b16 %v33
  %v102 = vunpack.c.h.b16 %v33
  %v103 = vunpack.c.l.b16 %v34
  %v104 = vunpack.c.h.b16 %v34
  %v105 = vunpack.c.l.b16 %v35
  %v106 = vunpack.c.h.b16 %v35
  %v107 = vunpack.c.l.b16 %v36
  %v108 = vunpack.c.h.b16 %v36
  %v109 = vpack.c.b16 %v75, %v73
  %v110 = vpack.c.b16 %v76, %v74
  %v111 = vpack.c.b16 %v79, %v77
  %v112 = vpack.c.b16 %v80, %v78
  %v113 = vpack.c.b16 %v83, %v81
  %v114 = vpack.c.b16 %v84, %v82
  %v115 = vpack.c.b16 %v87, %v85
  %v116 = vpack.c.b16 %v88, %v86
  %v117 = vpack.c.b16 %v91, %v89
  %v118 = vpack.c.b16 %v92, %v90
  %v119 = vpack.c.b16 %v95, %v93
  %v120 = vpack.c.b16 %v96, %v94
  %v121 = vpack.c.b16 %v99, %v97
  %v122 = vpack.c.b16 %v100, %v98
  %v123 = vpack.c.b16 %v103, %v101
  %v124 = vpack.c.b16 %v104, %v102
  %v125 = vpack.c.b16 %v107, %v105
  %v126 = vpack.c.b16 %v108, %v106
  %vm145 = vcmask 130048
  %v147 = vsel %vm145, %v50, 0
  %v150 = vsel %vm145, %v52, 0
  %152 = vmatprep.subr.bf16.mxu0 %v124
  %153 = vmatpush1.bf16.msra.mxu0 %v123
  %154 = vmatprep.subr.bf16.mxu0 %v122
  %155 = vmatpush1.bf16.msra.mxu0 %v121
  %156 = vmatprep.subr.bf16.mxu0 %v120
  %157 = vmatpush1.bf16.msra.mxu0 %v119
  %158 = vmatprep.subr.bf16.mxu0 %v118
  %159 = vmatpush1.bf16.msra.mxu0 %v117
  %160 = vmatprep.subr.bf16.mxu0 %v116
  %161 = vmatpush1.bf16.msra.mxu0 %v115
  %162 = vmatprep.subr.bf16.mxu0 %v114
  %163 = vmatpush1.bf16.msra.mxu0 %v113
  %164 = vmatprep.subr.bf16.mxu0 %v112
  %165 = vmatpush1.bf16.msra.mxu0 %v111
  %166 = vmatprep.subr.bf16.mxu0 %v110
  %167 = vmatpush1.bf16.msra.mxu0 %v109
  %168 = vmatprep.subr.bf16.mxu0 0
  %169 = vmatpush2.bf16.msra.mxu0 0
  %170 = vmatprep.subr.bf16.mxu0 0
  %171 = vmatpush2.bf16.msra.mxu0 0
  %172 = vmatprep.subr.bf16.mxu0 0
  %173 = vmatpush2.bf16.msra.mxu0 0
  %174 = vmatprep.subr.bf16.mxu0 0
  %175 = vmatpush2.bf16.msra.mxu0 0
  %176 = vmatprep.subr.bf16.mxu0 0
  %177 = vmatpush2.bf16.msra.mxu0 0
  %178 = vmatprep.subr.bf16.mxu0 0
  %179 = vmatpush2.bf16.msra.mxu0 0
  %180 = vmatprep.subr.bf16.mxu0 0
  %181 = vmatpush2.bf16.msra.mxu0 0
  %182 = vmatprep.subr.bf16.mxu0 %v126
  %183 = vmatpush2.bf16.msra.mxu0 %v125
  %184 = vmatprep.mubr.bf16.mxu0 %v147
  %185 = vmatmul.mubr.bf16.gmra.mxu0 %v49
  %v186 = vpop.f32.mrf.mxu0
  %v187 = vadd.f32 0.0, %v186
  %v188 = vpop.f32.mrf.mxu0
  %v189 = vadd.f32 0.0, %v188
  %v190 = vpop.f32.mrf.mxu0
  %v191 = vadd.f32 0.0, %v190
  %v192 = vpop.f32.mrf.mxu0
  %v193 = vadd.f32 0.0, %v192
  %194 = vmatprep.mubr.bf16.mxu0 %v150
  %195 = vmatmul.mubr.bf16.gmra.mxu0 %v51
  %v196 = vpop.f32.mrf.mxu0
  %v197 = vadd.f32 0.0, %v196
  %v198 = vpop.f32.mrf.mxu0
  %v199 = vadd.f32 0.0, %v198
  %v200 = vpop.f32.mrf.mxu0
  %v201 = vadd.f32 0.0, %v200
  %v202 = vpop.f32.mrf.mxu0
  %v203 = vadd.f32 0.0, %v202
  %204 = vdwg.mxu0
  %s205 = scalar_lea.vmem %s0, 144
  %v206 = vld [vmem:[%s205] sm:$0xff]
  %v207 = vld [vmem:[%s205 + $0x8] sm:$0xff]
  %v208 = vld [vmem:[%s205 + $0x10] sm:$0xff]
  %v209 = vld [vmem:[%s205 + $0x18] sm:$0xff]
  %v210 = vld [vmem:[%s205 + $0x20] sm:$0xff]
  %v211 = vld [vmem:[%s205 + $0x28] sm:$0xff]
  %v212 = vld [vmem:[%s205 + $0x30] sm:$0xff]
  %v213 = vld [vmem:[%s205 + $0x38] sm:$0xff]
  %v214 = vld [vmem:[%s205 + $0x40] sm:$0xff]
  %v215 = vld [vmem:[%s205 + $0x48] sm:$0xff]
  %v216 = vld [vmem:[%s205 + $0x50] sm:$0xff]
  %v217 = vld [vmem:[%s205 + $0x58] sm:$0xff]
  %v218 = vld [vmem:[%s205 + $0x60] sm:$0xff]
  %v219 = vld [vmem:[%s205 + $0x68] sm:$0xff]
  %v220 = vld [vmem:[%s205 + $0x70] sm:$0xff]
  %v221 = vld [vmem:[%s205 + $0x78] sm:$0xff]
  %v222 = vld [vmem:[%s205 + $0x80] sm:$0xff]
  %v223 = vld [vmem:[%s205 + $0x88] sm:$0xff]
  %v242 = vunpack.c.l.b16 %v206
  %v243 = vunpack.c.h.b16 %v206
  %v244 = vunpack.c.l.b16 %v207
  %v245 = vunpack.c.h.b16 %v207
  %v246 = vunpack.c.l.b16 %v208
  %v247 = vunpack.c.h.b16 %v208
  %v248 = vunpack.c.l.b16 %v209
  %v249 = vunpack.c.h.b16 %v209
  %v250 = vunpack.c.l.b16 %v210
  %v251 = vunpack.c.h.b16 %v210
  %v252 = vunpack.c.l.b16 %v211
  %v253 = vunpack.c.h.b16 %v211
  %v254 = vunpack.c.l.b16 %v212
  %v255 = vunpack.c.h.b16 %v212
  %v256 = vunpack.c.l.b16 %v213
  %v257 = vunpack.c.h.b16 %v213
  %v258 = vunpack.c.l.b16 %v214
  %v259 = vunpack.c.h.b16 %v214
  %v260 = vunpack.c.l.b16 %v215
  %v261 = vunpack.c.h.b16 %v215
  %v262 = vunpack.c.l.b16 %v216
  %v263 = vunpack.c.h.b16 %v216
  %v264 = vunpack.c.l.b16 %v217
  %v265 = vunpack.c.h.b16 %v217
  %v266 = vunpack.c.l.b16 %v218
  %v267 = vunpack.c.h.b16 %v218
  %v268 = vunpack.c.l.b16 %v219
  %v269 = vunpack.c.h.b16 %v219
  %v270 = vunpack.c.l.b16 %v220
  %v271 = vunpack.c.h.b16 %v220
  %v272 = vunpack.c.l.b16 %v221
  %v273 = vunpack.c.h.b16 %v221
  %v274 = vunpack.c.l.b16 %v222
  %v275 = vunpack.c.h.b16 %v222
  %v276 = vunpack.c.l.b16 %v223
  %v277 = vunpack.c.h.b16 %v223
  %v278 = vpack.c.b16 %v244, %v242
  %v279 = vpack.c.b16 %v245, %v243
  %v280 = vpack.c.b16 %v248, %v246
  %v281 = vpack.c.b16 %v249, %v247
  %v282 = vpack.c.b16 %v252, %v250
  %v283 = vpack.c.b16 %v253, %v251
  %v284 = vpack.c.b16 %v256, %v254
  %v285 = vpack.c.b16 %v257, %v255
  %v286 = vpack.c.b16 %v260, %v258
  %v287 = vpack.c.b16 %v261, %v259
  %v288 = vpack.c.b16 %v264, %v262
  %v289 = vpack.c.b16 %v265, %v263
  %v290 = vpack.c.b16 %v268, %v266
  %v291 = vpack.c.b16 %v269, %v267
  %v292 = vpack.c.b16 %v272, %v270
  %v293 = vpack.c.b16 %v273, %v271
  %v294 = vpack.c.b16 %v276, %v274
  %v295 = vpack.c.b16 %v277, %v275
  %314 = vmatprep.subr.bf16.mxu0 %v293
  %315 = vmatpush1.bf16.msra.mxu0 %v292
  %316 = vmatprep.subr.bf16.mxu0 %v291
  %317 = vmatpush1.bf16.msra.mxu0 %v290
  %318 = vmatprep.subr.bf16.mxu0 %v289
  %319 = vmatpush1.bf16.msra.mxu0 %v288
  %320 = vmatprep.subr.bf16.mxu0 %v287
  %321 = vmatpush1.bf16.msra.mxu0 %v286
  %322 = vmatprep.subr.bf16.mxu0 %v285
  %323 = vmatpush1.bf16.msra.mxu0 %v284
  %324 = vmatprep.subr.bf16.mxu0 %v283
  %325 = vmatpush1.bf16.msra.mxu0 %v282
  %326 = vmatprep.subr.bf16.mxu0 %v281
  %327 = vmatpush1.bf16.msra.mxu0 %v280
  %328 = vmatprep.subr.bf16.mxu0 %v279
  %329 = vmatpush1.bf16.msra.mxu0 %v278
  %330 = vmatprep.subr.bf16.mxu0 0
  %331 = vmatpush2.bf16.msra.mxu0 0
  %332 = vmatprep.subr.bf16.mxu0 0
  %333 = vmatpush2.bf16.msra.mxu0 0
  %334 = vmatprep.subr.bf16.mxu0 0
  %335 = vmatpush2.bf16.msra.mxu0 0
  %336 = vmatprep.subr.bf16.mxu0 0
  %337 = vmatpush2.bf16.msra.mxu0 0
  %338 = vmatprep.subr.bf16.mxu0 0
  %339 = vmatpush2.bf16.msra.mxu0 0
  %340 = vmatprep.subr.bf16.mxu0 0
  %341 = vmatpush2.bf16.msra.mxu0 0
  %342 = vmatprep.subr.bf16.mxu0 0
  %343 = vmatpush2.bf16.msra.mxu0 0
  %344 = vmatprep.subr.bf16.mxu0 %v295
  %345 = vmatpush2.bf16.msra.mxu0 %v294
  %346 = vmatprep.mubr.bf16.mxu0 %v147
  %347 = vmatmul.mubr.bf16.gmra.mxu0 %v49
  %v348 = vpop.f32.mrf.mxu0
  %v349 = vadd.f32 0.0, %v348
  %v350 = vpop.f32.mrf.mxu0
  %v351 = vadd.f32 0.0, %v350
  %v352 = vpop.f32.mrf.mxu0
  %v353 = vadd.f32 0.0, %v352
  %v354 = vpop.f32.mrf.mxu0
  %v355 = vadd.f32 0.0, %v354
  %356 = vmatprep.mubr.bf16.mxu0 %v150
  %357 = vmatmul.mubr.bf16.gmra.mxu0 %v51
  %v358 = vpop.f32.mrf.mxu0
  %v359 = vadd.f32 0.0, %v358
  %v360 = vpop.f32.mrf.mxu0
  %v361 = vadd.f32 0.0, %v360
  %v362 = vpop.f32.mrf.mxu0
  %v363 = vadd.f32 0.0, %v362
  %v364 = vpop.f32.mrf.mxu0
  %v365 = vadd.f32 0.0, %v364
  %366 = vdwg.mxu0
  %v367 = vmax.f32 %v187, %v349
  %v368 = vmax.f32 %v189, %v351
  %v369 = vmax.f32 %v191, %v353
  %v370 = vmax.f32 %v193, %v355
  %v371 = vmax.f32 %v197, %v359
  %v372 = vmax.f32 %v199, %v361
  %v373 = vmax.f32 %v201, %v363
  %v374 = vmax.f32 %v203, %v365
  %s375 = scalar_lea.vmem %s0, 288
  %v376 = vld [vmem:[%s375] sm:$0xff]
  %v377 = vld [vmem:[%s375 + $0x8] sm:$0xff]
  %v378 = vld [vmem:[%s375 + $0x10] sm:$0xff]
  %v379 = vld [vmem:[%s375 + $0x18] sm:$0xff]
  %v380 = vld [vmem:[%s375 + $0x20] sm:$0xff]
  %v381 = vld [vmem:[%s375 + $0x28] sm:$0xff]
  %v382 = vld [vmem:[%s375 + $0x30] sm:$0xff]
  %v383 = vld [vmem:[%s375 + $0x38] sm:$0xff]
  %v384 = vld [vmem:[%s375 + $0x40] sm:$0xff]
  %v385 = vld [vmem:[%s375 + $0x48] sm:$0xff]
  %v386 = vld [vmem:[%s375 + $0x50] sm:$0xff]
  %v387 = vld [vmem:[%s375 + $0x58] sm:$0xff]
  %v388 = vld [vmem:[%s375 + $0x60] sm:$0xff]
  %v389 = vld [vmem:[%s375 + $0x68] sm:$0xff]
  %v390 = vld [vmem:[%s375 + $0x70] sm:$0xff]
  %v391 = vld [vmem:[%s375 + $0x78] sm:$0xff]
  %v392 = vld [vmem:[%s375 + $0x80] sm:$0xff]
  %v393 = vld [vmem:[%s375 + $0x88] sm:$0xff]
  %v412 = vunpack.c.l.b16 %v376
  %v413 = vunpack.c.h.b16 %v376
  %v414 = vunpack.c.l.b16 %v377
  %v415 = vunpack.c.h.b16 %v377
  %v416 = vunpack.c.l.b16 %v378
  %v417 = vunpack.c.h.b16 %v378
  %v418 = vunpack.c.l.b16 %v379
  %v419 = vunpack.c.h.b16 %v379
  %v420 = vunpack.c.l.b16 %v380
  %v421 = vunpack.c.h.b16 %v380
  %v422 = vunpack.c.l.b16 %v381
  %v423 = vunpack.c.h.b16 %v381
  %v424 = vunpack.c.l.b16 %v382
  %v425 = vunpack.c.h.b16 %v382
  %v426 = vunpack.c.l.b16 %v383
  %v427 = vunpack.c.h.b16 %v383
  %v428 = vunpack.c.l.b16 %v384
  %v429 = vunpack.c.h.b16 %v384
  %v430 = vunpack.c.l.b16 %v385
  %v431 = vunpack.c.h.b16 %v385
  %v432 = vunpack.c.l.b16 %v386
  %v433 = vunpack.c.h.b16 %v386
  %v434 = vunpack.c.l.b16 %v387
  %v435 = vunpack.c.h.b16 %v387
  %v436 = vunpack.c.l.b16 %v388
  %v437 = vunpack.c.h.b16 %v388
  %v438 = vunpack.c.l.b16 %v389
  %v439 = vunpack.c.h.b16 %v389
  %v440 = vunpack.c.l.b16 %v390
  %v441 = vunpack.c.h.b16 %v390
  %v442 = vunpack.c.l.b16 %v391
  %v443 = vunpack.c.h.b16 %v391
  %v444 = vunpack.c.l.b16 %v392
  %v445 = vunpack.c.h.b16 %v392
  %v446 = vunpack.c.l.b16 %v393
  %v447 = vunpack.c.h.b16 %v393
  %v448 = vpack.c.b16 %v414, %v412
  %v449 = vpack.c.b16 %v415, %v413
  %v450 = vpack.c.b16 %v418, %v416
  %v451 = vpack.c.b16 %v419, %v417
  %v452 = vpack.c.b16 %v422, %v420
  %v453 = vpack.c.b16 %v423, %v421
  %v454 = vpack.c.b16 %v426, %v424
  %v455 = vpack.c.b16 %v427, %v425
  %v456 = vpack.c.b16 %v430, %v428
  %v457 = vpack.c.b16 %v431, %v429
  %v458 = vpack.c.b16 %v434, %v432
  %v459 = vpack.c.b16 %v435, %v433
  %v460 = vpack.c.b16 %v438, %v436
  %v461 = vpack.c.b16 %v439, %v437
  %v462 = vpack.c.b16 %v442, %v440
  %v463 = vpack.c.b16 %v443, %v441
  %v464 = vpack.c.b16 %v446, %v444
  %v465 = vpack.c.b16 %v447, %v445
  %484 = vmatprep.subr.bf16.mxu0 %v463
  %485 = vmatpush1.bf16.msra.mxu0 %v462
  %486 = vmatprep.subr.bf16.mxu0 %v461
  %487 = vmatpush1.bf16.msra.mxu0 %v460
  %488 = vmatprep.subr.bf16.mxu0 %v459
  %489 = vmatpush1.bf16.msra.mxu0 %v458
  %490 = vmatprep.subr.bf16.mxu0 %v457
  %491 = vmatpush1.bf16.msra.mxu0 %v456
  %492 = vmatprep.subr.bf16.mxu0 %v455
  %493 = vmatpush1.bf16.msra.mxu0 %v454
  %494 = vmatprep.subr.bf16.mxu0 %v453
  %495 = vmatpush1.bf16.msra.mxu0 %v452
  %496 = vmatprep.subr.bf16.mxu0 %v451
  %497 = vmatpush1.bf16.msra.mxu0 %v450
  %498 = vmatprep.subr.bf16.mxu0 %v449
  %499 = vmatpush1.bf16.msra.mxu0 %v448
  %500 = vmatprep.subr.bf16.mxu0 0
  %501 = vmatpush2.bf16.msra.mxu0 0
  %502 = vmatprep.subr.bf16.mxu0 0
  %503 = vmatpush2.bf16.msra.mxu0 0
  %504 = vmatprep.subr.bf16.mxu0 0
  %505 = vmatpush2.bf16.msra.mxu0 0
  %506 = vmatprep.subr.bf16.mxu0 0
  %507 = vmatpush2.bf16.msra.mxu0 0
  %508 = vmatprep.subr.bf16.mxu0 0
  %509 = vmatpush2.bf16.msra.mxu0 0
  %510 = vmatprep.subr.bf16.mxu0 0
  %511 = vmatpush2.bf16.msra.mxu0 0
  %512 = vmatprep.subr.bf16.mxu0 0
  %513 = vmatpush2.bf16.msra.mxu0 0
  %514 = vmatprep.subr.bf16.mxu0 %v465
  %515 = vmatpush2.bf16.msra.mxu0 %v464
  %516 = vmatprep.mubr.bf16.mxu0 %v147
  %517 = vmatmul.mubr.bf16.gmra.mxu0 %v49
  %v518 = vpop.f32.mrf.mxu0
  %v519 = vadd.f32 0.0, %v518
  %v520 = vpop.f32.mrf.mxu0
  %v521 = vadd.f32 0.0, %v520
  %v522 = vpop.f32.mrf.mxu0
  %v523 = vadd.f32 0.0, %v522
  %v524 = vpop.f32.mrf.mxu0
  %v525 = vadd.f32 0.0, %v524
  %526 = vmatprep.mubr.bf16.mxu0 %v150
  %527 = vmatmul.mubr.bf16.gmra.mxu0 %v51
  %v528 = vpop.f32.mrf.mxu0
  %v529 = vadd.f32 0.0, %v528
  %v530 = vpop.f32.mrf.mxu0
  %v531 = vadd.f32 0.0, %v530
  %v532 = vpop.f32.mrf.mxu0
  %v533 = vadd.f32 0.0, %v532
  %v534 = vpop.f32.mrf.mxu0
  %v535 = vadd.f32 0.0, %v534
  %536 = vdwg.mxu0
  %v537 = vmax.f32 %v367, %v519
  %v538 = vmax.f32 %v368, %v521
  %v539 = vmax.f32 %v369, %v523
  %v540 = vmax.f32 %v370, %v525
  %v541 = vmax.f32 %v371, %v529
  %v542 = vmax.f32 %v372, %v531
  %v543 = vmax.f32 %v373, %v533
  %v544 = vmax.f32 %v374, %v535
  %s545 = scalar_lea.vmem %s0, 432
  %v546 = vld [vmem:[%s545] sm:$0xff]
  %v547 = vld [vmem:[%s545 + $0x8] sm:$0xff]
  %v548 = vld [vmem:[%s545 + $0x10] sm:$0xff]
  %v549 = vld [vmem:[%s545 + $0x18] sm:$0xff]
  %v550 = vld [vmem:[%s545 + $0x20] sm:$0xff]
  %v551 = vld [vmem:[%s545 + $0x28] sm:$0xff]
  %v552 = vld [vmem:[%s545 + $0x30] sm:$0xff]
  %v553 = vld [vmem:[%s545 + $0x38] sm:$0xff]
  %v554 = vld [vmem:[%s545 + $0x40] sm:$0xff]
  %v555 = vld [vmem:[%s545 + $0x48] sm:$0xff]
  %v556 = vld [vmem:[%s545 + $0x50] sm:$0xff]
  %v557 = vld [vmem:[%s545 + $0x58] sm:$0xff]
  %v558 = vld [vmem:[%s545 + $0x60] sm:$0xff]
  %v559 = vld [vmem:[%s545 + $0x68] sm:$0xff]
  %v560 = vld [vmem:[%s545 + $0x70] sm:$0xff]
  %v561 = vld [vmem:[%s545 + $0x78] sm:$0xff]
  %v562 = vld [vmem:[%s545 + $0x80] sm:$0xff]
  %v563 = vld [vmem:[%s545 + $0x88] sm:$0xff]
  %v582 = vunpack.c.l.b16 %v546
  %v583 = vunpack.c.h.b16 %v546
  %v584 = vunpack.c.l.b16 %v547
  %v585 = vunpack.c.h.b16 %v547
  %v586 = vunpack.c.l.b16 %v548
  %v587 = vunpack.c.h.b16 %v548
  %v588 = vunpack.c.l.b16 %v549
  %v589 = vunpack.c.h.b16 %v549
  %v590 = vunpack.c.l.b16 %v550
  %v591 = vunpack.c.h.b16 %v550
  %v592 = vunpack.c.l.b16 %v551
  %v593 = vunpack.c.h.b16 %v551
  %v594 = vunpack.c.l.b16 %v552
  %v595 = vunpack.c.h.b16 %v552
  %v596 = vunpack.c.l.b16 %v553
  %v597 = vunpack.c.h.b16 %v553
  %v598 = vunpack.c.l.b16 %v554
  %v599 = vunpack.c.h.b16 %v554
  %v600 = vunpack.c.l.b16 %v555
  %v601 = vunpack.c.h.b16 %v555
  %v602 = vunpack.c.l.b16 %v556
  %v603 = vunpack.c.h.b16 %v556
  %v604 = vunpack.c.l.b16 %v557
  %v605 = vunpack.c.h.b16 %v557
  %v606 = vunpack.c.l.b16 %v558
  %v607 = vunpack.c.h.b16 %v558
  %v608 = vunpack.c.l.b16 %v559
  %v609 = vunpack.c.h.b16 %v559
  %v610 = vunpack.c.l.b16 %v560
  %v611 = vunpack.c.h.b16 %v560
  %v612 = vunpack.c.l.b16 %v561
  %v613 = vunpack.c.h.b16 %v561
  %v614 = vunpack.c.l.b16 %v562
  %v615 = vunpack.c.h.b16 %v562
  %v616 = vunpack.c.l.b16 %v563
  %v617 = vunpack.c.h.b16 %v563
  %v618 = vpack.c.b16 %v584, %v582
  %v619 = vpack.c.b16 %v585, %v583
  %v620 = vpack.c.b16 %v588, %v586
  %v621 = vpack.c.b16 %v589, %v587
  %v622 = vpack.c.b16 %v592, %v590
  %v623 = vpack.c.b16 %v593, %v591
  %v624 = vpack.c.b16 %v596, %v594
  %v625 = vpack.c.b16 %v597, %v595
  %v626 = vpack.c.b16 %v600, %v598
  %v627 = vpack.c.b16 %v601, %v599
  %v628 = vpack.c.b16 %v604, %v602
  %v629 = vpack.c.b16 %v605, %v603
  %v630 = vpack.c.b16 %v608, %v606
  %v631 = vpack.c.b16 %v609, %v607
  %v632 = vpack.c.b16 %v612, %v610
  %v633 = vpack.c.b16 %v613, %v611
  %v634 = vpack.c.b16 %v616, %v614
  %v635 = vpack.c.b16 %v617, %v615
  %654 = vmatprep.subr.bf16.mxu0 %v633
  %655 = vmatpush1.bf16.msra.mxu0 %v632
  %656 = vmatprep.subr.bf16.mxu0 %v631
  %657 = vmatpush1.bf16.msra.mxu0 %v630
  %658 = vmatprep.subr.bf16.mxu0 %v629
  %659 = vmatpush1.bf16.msra.mxu0 %v628
  %660 = vmatprep.subr.bf16.mxu0 %v627
  %661 = vmatpush1.bf16.msra.mxu0 %v626
  %662 = vmatprep.subr.bf16.mxu0 %v625
  %663 = vmatpush1.bf16.msra.mxu0 %v624
  %664 = vmatprep.subr.bf16.mxu0 %v623
  %665 = vmatpush1.bf16.msra.mxu0 %v622
  %666 = vmatprep.subr.bf16.mxu0 %v621
  %667 = vmatpush1.bf16.msra.mxu0 %v620
  %668 = vmatprep.subr.bf16.mxu0 %v619
  %669 = vmatpush1.bf16.msra.mxu0 %v618
  %670 = vmatprep.subr.bf16.mxu0 0
  %671 = vmatpush2.bf16.msra.mxu0 0
  %672 = vmatprep.subr.bf16.mxu0 0
  %673 = vmatpush2.bf16.msra.mxu0 0
  %674 = vmatprep.subr.bf16.mxu0 0
  %675 = vmatpush2.bf16.msra.mxu0 0
  %676 = vmatprep.subr.bf16.mxu0 0
  %677 = vmatpush2.bf16.msra.mxu0 0
  %678 = vmatprep.subr.bf16.mxu0 0
  %679 = vmatpush2.bf16.msra.mxu0 0
  %680 = vmatprep.subr.bf16.mxu0 0
  %681 = vmatpush2.bf16.msra.mxu0 0
  %682 = vmatprep.subr.bf16.mxu0 0
  %683 = vmatpush2.bf16.msra.mxu0 0
  %684 = vmatprep.subr.bf16.mxu0 %v635
  %685 = vmatpush2.bf16.msra.mxu0 %v634
  %686 = vmatprep.mubr.bf16.mxu0 %v147
  %687 = vmatmul.mubr.bf16.gmra.mxu0 %v49
  %v688 = vpop.f32.mrf.mxu0
  %v689 = vadd.f32 0.0, %v688
  %v690 = vpop.f32.mrf.mxu0
  %v691 = vadd.f32 0.0, %v690
  %v692 = vpop.f32.mrf.mxu0
  %v693 = vadd.f32 0.0, %v692
  %v694 = vpop.f32.mrf.mxu0
  %v695 = vadd.f32 0.0, %v694
  %696 = vmatprep.mubr.bf16.mxu0 %v150
  %697 = vmatmul.mubr.bf16.gmra.mxu0 %v51
  %v698 = vpop.f32.mrf.mxu0
  %v699 = vadd.f32 0.0, %v698
  %v700 = vpop.f32.mrf.mxu0
  %v701 = vadd.f32 0.0, %v700
  %v702 = vpop.f32.mrf.mxu0
  %v703 = vadd.f32 0.0, %v702
  %v704 = vpop.f32.mrf.mxu0
  %v705 = vadd.f32 0.0, %v704
  %706 = vdwg.mxu0
  %v707 = vmax.f32 %v537, %v689
  %v708 = vmax.f32 %v538, %v691
  %v709 = vmax.f32 %v539, %v693
  %v710 = vmax.f32 %v540, %v695
  %v711 = vmax.f32 %v541, %v699
  %v712 = vmax.f32 %v542, %v701
  %v713 = vmax.f32 %v543, %v703
  %v714 = vmax.f32 %v544, %v705
  %v715 = vld [vmem:[%s2] sm:$0xff]
  %v716 = vld [vmem:[%s2 + $0x8] sm:$0xff]
  %v717 = vld [vmem:[%s2 + $0x10] sm:$0xff]
  %v718 = vld [vmem:[%s2 + $0x18] sm:$0xff]
  %720 = vset.pattern.permute.xlu0 0
  %721 = vperm.xlu0 %720, %v715
  %v722 = vpop.permute.xlu0 %721
  %725 = vset.pattern.permute.xlu0 0
  %726 = vperm.xlu0 %725, %v716
  %v727 = vpop.permute.xlu0 %726
  %730 = vset.pattern.permute.xlu0 0
  %731 = vperm.xlu0 %730, %v717
  %v732 = vpop.permute.xlu0 %731
  %735 = vset.pattern.permute.xlu0 0
  %736 = vperm.xlu0 %735, %v718
  %v737 = vpop.permute.xlu0 %736
  %v739 = vadd.f32 %v707, %v722
  %v740 = vadd.f32 %v708, %v722
  %v741 = vadd.f32 %v709, %v727
  %v742 = vadd.f32 %v710, %v727
  %v743 = vadd.f32 %v711, %v732
  %v744 = vadd.f32 %v712, %v732
  %v745 = vadd.f32 %v713, %v737
  %v746 = vadd.f32 %v714, %v737
  %v747 = vmax.f32 %v739, 0.0
  %v748 = vmax.f32 %v740, 0.0
  %v749 = vmax.f32 %v741, 0.0
  %v750 = vmax.f32 %v742, 0.0
  %v751 = vmax.f32 %v743, 0.0
  %v752 = vmax.f32 %v744, 0.0
  %v753 = vmax.f32 %v745, 0.0
  %v754 = vmax.f32 %v746, 0.0
  %v755 = vpack.c.bf16 %v749, %v747
  %v756 = vpack.c.bf16 %v750, %v748
  %v757 = vpack.c.bf16 %v753, %v751
  %v758 = vpack.c.bf16 %v754, %v752
  %v763 = vunpack.c.l.b16 %v755
  %v764 = vunpack.c.l.b16 %v756
  %v765 = vunpack.c.h.b16 %v755
  %v766 = vunpack.c.h.b16 %v756
  %v767 = vunpack.c.l.b16 %v757
  %v768 = vunpack.c.l.b16 %v758
  %v769 = vunpack.c.h.b16 %v757
  %v770 = vunpack.c.h.b16 %v758
  %v771 = vpack.c.b16 %v764, %v763
  %v772 = vpack.c.b16 %v766, %v765
  %v773 = vpack.c.b16 %v768, %v767
  %v774 = vpack.c.b16 %v770, %v769
  %779 = vst [vmem:[%s3] sm:$0xff] %v771
  %780 = vst [vmem:[%s3 + $0x8] sm:$0xff] %v772
  %781 = vst [vmem:[%s3 + $0x10] sm:$0xff] %v773
  %782 = vst [vmem:[%s3 + $0x18] sm:$0xff] %v774
  // Predicated region
  $region14: #{mnist_cnn_forward.4} parent=0 // pred_check
    _
  $region15: #{mnist_cnn_forward.4} parent=0 // pred_check_branch
    %784 = sbr.rel (0) target = $region17
  $region16: #{mnist_cnn_forward.4} parent=0 // pred_region
    _
  $region17: #{mnist_cnn_forward.4} parent=0 // pred_fallthru
    _
  // Predicated region
  $region18: #{mnist_cnn_forward.4} parent=0 // pred_check
    _
  $region19: #{mnist_cnn_forward.4} parent=0 // pred_check_branch
    %786 = sbr.rel (0) target = $region21
  $region20: #{mnist_cnn_forward.4} parent=0 // pred_region
    _
  $region21: #{mnist_cnn_forward.4} parent=0 // pred_fallthru
    _

// kernel: mnist_cnn_forward.5
$region0: #{mnist_cnn_forward.5}
  #allocation0 [shape = 'u32[]', space=smem, size = 0x4, offset = 0x4, fixed_abs, tag = 'smem constant byte address 0x4 - core index']
  #allocation1 [shape = 'u32[144,128]{1,0:T(1,128)}', space=vmem, size = 0x12000, scoped, tag = 'internal scratch']
  %s0 = inlined_call_operand.vmem [shape: bf16[4,288,128], index: 0, kind: input, shape index: {}]
  %s1 = inlined_call_operand.vmem [shape: bf16[16,288], index: 1, kind: input, shape index: {}]
  %s2 = inlined_call_operand.vmem [shape: f32[16,1], index: 2, kind: input, shape index: {}]
  %s3 = inlined_call_operand.vmem [shape: f32[10,16], index: 3, kind: input, shape index: {}]
  %s4 = inlined_call_operand.vmem [shape: f32[10,1], index: 4, kind: input, shape index: {}]
  %s5 = inlined_call_operand.vmem [shape: f32[10,128], index: 5, kind: output, shape index: {}]
  %s6 = sld [smem:[#allocation0]]
  $region30: #{mnist_cnn_forward.5} parent=0
    _
  %s8 = ssub.s32 1, %s6
  %s9 = scalar_select 0, %s8, %s6
  // Predicated region
  $region2: #{mnist_cnn_forward.5} parent=0 // pred_check
    _
  $region3: #{mnist_cnn_forward.5} parent=0 // pred_check_branch
    %11 = sbr.rel (0) target = $region5
  $region4: #{mnist_cnn_forward.5} parent=0 // pred_region
    _
  $region5: #{mnist_cnn_forward.5} parent=0 // pred_fallthru
    _
  // Predicated region
  $region6: #{mnist_cnn_forward.5} parent=0 // pred_check
    _
  $region7: #{mnist_cnn_forward.5} parent=0 // pred_check_branch
    %13 = sbr.rel (0) target = $region9
  $region8: #{mnist_cnn_forward.5} parent=0 // pred_region
    _
  $region9: #{mnist_cnn_forward.5} parent=0 // pred_fallthru
    _
  // Predicated region
  $region10: #{mnist_cnn_forward.5} parent=0 // pred_check
    _
  $region11: #{mnist_cnn_forward.5} parent=0 // pred_check_branch
    %15 = sbr.rel (0) target = $region13
  $region12: #{mnist_cnn_forward.5} parent=0 // pred_region
    _
  $region13: #{mnist_cnn_forward.5} parent=0 // pred_fallthru
    _
  // Predicated region
  $region14: #{mnist_cnn_forward.5} parent=0 // pred_check
    _
  $region15: #{mnist_cnn_forward.5} parent=0 // pred_check_branch
    %17 = sbr.rel (0) target = $region17
  $region16: #{mnist_cnn_forward.5} parent=0 // pred_region
    _
  $region17: #{mnist_cnn_forward.5} parent=0 // pred_fallthru
    _
  // Predicated region
  $region18: #{mnist_cnn_forward.5} parent=0 // pred_check
    _
  $region19: #{mnist_cnn_forward.5} parent=0 // pred_check_branch
    %19 = sbr.rel (0) target = $region21
  $region20: #{mnist_cnn_forward.5} parent=0 // pred_region
    _
  $region21: #{mnist_cnn_forward.5} parent=0 // pred_fallthru
    _
  %v21 = vld [vmem:[%s1] sm:$0xff]
  %v22 = vld [vmem:[%s1 + $0x8] sm:$0xf]
  %v23 = vld [vmem:[%s1 + $0xc] sm:$0xff]
  %v24 = vld [vmem:[%s1 + $0x14] sm:$0xf]
  %v25 = vld [vmem:[%s0] sm:$0xf]
  %v26 = vld [vmem:[%s0 + $0x4] sm:$0xf]
  %v27 = vld [vmem:[%s0 + $0x8] sm:$0xf]
  %v28 = vld [vmem:[%s0 + $0xc] sm:$0xf]
  %v29 = vld [vmem:[%s0 + $0x10] sm:$0xf]
  %v30 = vld [vmem:[%s0 + $0x14] sm:$0xf]
  %v31 = vld [vmem:[%s0 + $0x18] sm:$0xf]
  %v32 = vld [vmem:[%s0 + $0x1c] sm:$0xf]
  %v33 = vld [vmem:[%s0 + $0x20] sm:$0xf]
  %v34 = vld [vmem:[%s0 + $0x24] sm:$0xf]
  %v35 = vld [vmem:[%s0 + $0x28] sm:$0xf]
  %v36 = vld [vmem:[%s0 + $0x2c] sm:$0xf]
  %v37 = vld [vmem:[%s0 + $0x30] sm:$0xf]
  %v38 = vld [vmem:[%s0 + $0x34] sm:$0xf]
  %v39 = vld [vmem:[%s0 + $0x38] sm:$0xf]
  %v40 = vld [vmem:[%s0 + $0x3c] sm:$0xf]
  %v41 = vld [vmem:[%s0 + $0x40] sm:$0xf]
  %v42 = vld [vmem:[%s0 + $0x44] sm:$0xf]
  %v43 = vld [vmem:[%s0 + $0x48] sm:$0xf]
  %v44 = vld [vmem:[%s0 + $0x4c] sm:$0xf]
  %v45 = vld [vmem:[%s0 + $0x50] sm:$0xf]
  %v46 = vld [vmem:[%s0 + $0x54] sm:$0xf]
  %v47 = vld [vmem:[%s0 + $0x58] sm:$0xf]
  %v48 = vld [vmem:[%s0 + $0x5c] sm:$0xf]
  %v49 = vld [vmem:[%s0 + $0x60] sm:$0xf]
  %v50 = vld [vmem:[%s0 + $0x64] sm:$0xf]
  %v51 = vld [vmem:[%s0 + $0x68] sm:$0xf]
  %v52 = vld [vmem:[%s0 + $0x6c] sm:$0xf]
  %v53 = vld [vmem:[%s0 + $0x70] sm:$0xf]
  %v54 = vld [vmem:[%s0 + $0x74] sm:$0xf]
  %v55 = vld [vmem:[%s0 + $0x78] sm:$0xf]
  %v56 = vld [vmem:[%s0 + $0x7c] sm:$0xf]
  %v57 = vld [vmem:[%s0 + $0x80] sm:$0xf]
  %v58 = vld [vmem:[%s0 + $0x84] sm:$0xf]
  %v59 = vld [vmem:[%s0 + $0x88] sm:$0xf]
  %v60 = vld [vmem:[%s0 + $0x8c] sm:$0xf]
  %v65 = vunpack.c.l.b16 %v21
  %v66 = vunpack.c.h.b16 %v21
  %v67 = vunpack.c.l.b16 %v22
  %v68 = vunpack.c.l.b16 %v23
  %v69 = vunpack.c.h.b16 %v23
  %v70 = vunpack.c.l.b16 %v24
  %v71 = vpack.c.b16 %v68, %v65
  %v72 = vpack.c.b16 %v69, %v66
  %v73 = vpack.c.b16 %v70, %v67
  %v112 = vunpack.c.l.b16 %v25
  %v113 = vunpack.c.l.b16 %v26
  %v114 = vunpack.c.l.b16 %v27
  %v115 = vunpack.c.l.b16 %v28
  %v116 = vunpack.c.l.b16 %v29
  %v117 = vunpack.c.l.b16 %v30
  %v118 = vunpack.c.l.b16 %v31
  %v119 = vunpack.c.l.b16 %v32
  %v120 = vunpack.c.l.b16 %v33
  %v121 = vunpack.c.l.b16 %v34
  %v122 = vunpack.c.l.b16 %v35
  %v123 = vunpack.c.l.b16 %v36
  %v124 = vunpack.c.l.b16 %v37
  %v125 = vunpack.c.l.b16 %v38
  %v126 = vunpack.c.l.b16 %v39
  %v127 = vunpack.c.l.b16 %v40
  %v128 = vunpack.c.l.b16 %v41
  %v129 = vunpack.c.l.b16 %v42
  %v130 = vunpack.c.l.b16 %v43
  %v131 = vunpack.c.l.b16 %v44
  %v132 = vunpack.c.l.b16 %v45
  %v133 = vunpack.c.l.b16 %v46
  %v134 = vunpack.c.l.b16 %v47
  %v135 = vunpack.c.l.b16 %v48
  %v136 = vunpack.c.l.b16 %v49
  %v137 = vunpack.c.l.b16 %v50
  %v138 = vunpack.c.l.b16 %v51
  %v139 = vunpack.c.l.b16 %v52
  %v140 = vunpack.c.l.b16 %v53
  %v141 = vunpack.c.l.b16 %v54
  %v142 = vunpack.c.l.b16 %v55
  %v143 = vunpack.c.l.b16 %v56
  %v144 = vunpack.c.l.b16 %v57
  %v145 = vunpack.c.l.b16 %v58
  %v146 = vunpack.c.l.b16 %v59
  %v147 = vunpack.c.l.b16 %v60
  %v148 = vpack.c.b16 %v113, %v112
  %v149 = vpack.c.b16 %v115, %v114
  %v150 = vpack.c.b16 %v117, %v116
  %v151 = vpack.c.b16 %v119, %v118
  %v152 = vpack.c.b16 %v121, %v120
  %v153 = vpack.c.b16 %v123, %v122
  %v154 = vpack.c.b16 %v125, %v124
  %v155 = vpack.c.b16 %v127, %v126
  %v156 = vpack.c.b16 %v129, %v128
  %v157 = vpack.c.b16 %v131, %v130
  %v158 = vpack.c.b16 %v133, %v132
  %v159 = vpack.c.b16 %v135, %v134
  %v160 = vpack.c.b16 %v137, %v136
  %v161 = vpack.c.b16 %v139, %v138
  %v162 = vpack.c.b16 %v141, %v140
  %v163 = vpack.c.b16 %v143, %v142
  %v164 = vpack.c.b16 %v145, %v144
  %v165 = vpack.c.b16 %v147, %v146
  %vm184 = vcmask 261120
  %v186 = vsel %vm184, %v73, 0
  %188 = vmatprep.subr.bf16.mxu0 0
  %189 = vmatpush1.bf16.msra.mxu0 %v155
  %190 = vmatprep.subr.bf16.mxu0 0
  %191 = vmatpush1.bf16.msra.mxu0 %v154
  %192 = vmatprep.subr.bf16.mxu0 0
  %193 = vmatpush1.bf16.msra.mxu0 %v153
  %194 = vmatprep.subr.bf16.mxu0 0
  %195 = vmatpush1.bf16.msra.mxu0 %v152
  %196 = vmatprep.subr.bf16.mxu0 0
  %197 = vmatpush1.bf16.msra.mxu0 %v151
  %198 = vmatprep.subr.bf16.mxu0 0
  %199 = vmatpush1.bf16.msra.mxu0 %v150
  %200 = vmatprep.subr.bf16.mxu0 0
  %201 = vmatpush1.bf16.msra.mxu0 %v149
  %202 = vmatprep.subr.bf16.mxu0 0
  %203 = vmatpush1.bf16.msra.mxu0 %v148
  %204 = vmatprep.subr.bf16.mxu0 0
  %205 = vmatpush2.bf16.msra.mxu0 %v163
  %206 = vmatprep.subr.bf16.mxu0 0
  %207 = vmatpush2.bf16.msra.mxu0 %v162
  %208 = vmatprep.subr.bf16.mxu0 0
  %209 = vmatpush2.bf16.msra.mxu0 %v161
  %210 = vmatprep.subr.bf16.mxu0 0
  %211 = vmatpush2.bf16.msra.mxu0 %v160
  %212 = vmatprep.subr.bf16.mxu0 0
  %213 = vmatpush2.bf16.msra.mxu0 %v159
  %214 = vmatprep.subr.bf16.mxu0 0
  %215 = vmatpush2.bf16.msra.mxu0 %v158
  %216 = vmatprep.subr.bf16.mxu0 0
  %217 = vmatpush2.bf16.msra.mxu0 %v157
  %218 = vmatprep.subr.bf16.mxu0 0
  %219 = vmatpush2.bf16.msra.mxu0 %v156
  %220 = vmatprep.mubr.bf16.mxu0 %v72
  %221 = vmatmul.mubr.bf16.gmra.mxu0 %v71
  %v222 = vpop.f32.mrf.mxu0
  %v223 = vadd.f32 0.0, %v222
  %v224 = vpop.f32.mrf.mxu0
  %v225 = vpop.f32.mrf.mxu0
  %v226 = vadd.f32 0.0, %v225
  %v227 = vpop.f32.mrf.mxu0
  %228 = vdwg.mxu0
  %229 = vmatprep.subr.bf16.mxu0 0
  %230 = vmatpush1.bf16.msra.mxu0 0
  %231 = vmatprep.subr.bf16.mxu0 0
  %232 = vmatpush1.bf16.msra.mxu0 0
  %233 = vmatprep.subr.bf16.mxu0 0
  %234 = vmatpush1.bf16.msra.mxu0 0
  %235 = vmatprep.subr.bf16.mxu0 0
  %236 = vmatpush1.bf16.msra.mxu0 0
  %237 = vmatprep.subr.bf16.mxu0 0
  %238 = vmatpush1.bf16.msra.mxu0 0
  %239 = vmatprep.subr.bf16.mxu0 0
  %240 = vmatpush1.bf16.msra.mxu0 0
  %241 = vmatprep.subr.bf16.mxu0 0
  %242 = vmatpush1.bf16.msra.mxu0 %v165
  %243 = vmatprep.subr.bf16.mxu0 0
  %244 = vmatpush1.bf16.msra.mxu0 %v164
  %245 = vmatprep.subr.bf16.mxu0 0
  %246 = vmatpush2.bf16.msra.mxu0 0
  %247 = vmatprep.subr.bf16.mxu0 0
  %248 = vmatpush2.bf16.msra.mxu0 0
  %249 = vmatprep.subr.bf16.mxu0 0
  %250 = vmatpush2.bf16.msra.mxu0 0
  %251 = vmatprep.subr.bf16.mxu0 0
  %252 = vmatpush2.bf16.msra.mxu0 0
  %253 = vmatprep.subr.bf16.mxu0 0
  %254 = vmatpush2.bf16.msra.mxu0 0
  %255 = vmatprep.subr.bf16.mxu0 0
  %256 = vmatpush2.bf16.msra.mxu0 0
  %257 = vmatprep.subr.bf16.mxu0 0
  %258 = vmatpush2.bf16.msra.mxu0 0
  %259 = vmatprep.subr.bf16.mxu0 0
  %260 = vmatpush2.bf16.msra.mxu0 0
  %261 = vmatprep.mubr.bf16.mxu0 0
  %262 = vmatmul.mubr.bf16.gmra.mxu0 %v186
  %v263 = vpop.f32.mrf.mxu0
  %v264 = vadd.f32 %v223, %v263
  %v265 = vpop.f32.mrf.mxu0
  %v266 = vpop.f32.mrf.mxu0
  %v267 = vadd.f32 %v226, %v266
  %v268 = vpop.f32.mrf.mxu0
  %269 = vdwg.mxu0
  %s270 = scalar_lea.vmem %s0, 144
  %v271 = vld [vmem:[%s270] sm:$0xf]
  %v272 = vld [vmem:[%s270 + $0x4] sm:$0xf]
  %v273 = vld [vmem:[%s270 + $0x8] sm:$0xf]
  %v274 = vld [vmem:[%s270 + $0xc] sm:$0xf]
  %v275 = vld [vmem:[%s270 + $0x10] sm:$0xf]
  %v276 = vld [vmem:[%s270 + $0x14] sm:$0xf]
  %v277 = vld [vmem:[%s270 + $0x18] sm:$0xf]
  %v278 = vld [vmem:[%s270 + $0x1c] sm:$0xf]
  %v279 = vld [vmem:[%s270 + $0x20] sm:$0xf]
  %v280 = vld [vmem:[%s270 + $0x24] sm:$0xf]
  %v281 = vld [vmem:[%s270 + $0x28] sm:$0xf]
  %v282 = vld [vmem:[%s270 + $0x2c] sm:$0xf]
  %v283 = vld [vmem:[%s270 + $0x30] sm:$0xf]
  %v284 = vld [vmem:[%s270 + $0x34] sm:$0xf]
  %v285 = vld [vmem:[%s270 + $0x38] sm:$0xf]
  %v286 = vld [vmem:[%s270 + $0x3c] sm:$0xf]
  %v287 = vld [vmem:[%s270 + $0x40] sm:$0xf]
  %v288 = vld [vmem:[%s270 + $0x44] sm:$0xf]
  %v289 = vld [vmem:[%s270 + $0x48] sm:$0xf]
  %v290 = vld [vmem:[%s270 + $0x4c] sm:$0xf]
  %v291 = vld [vmem:[%s270 + $0x50] sm:$0xf]
  %v292 = vld [vmem:[%s270 + $0x54] sm:$0xf]
  %v293 = vld [vmem:[%s270 + $0x58] sm:$0xf]
  %v294 = vld [vmem:[%s270 + $0x5c] sm:$0xf]
  %v295 = vld [vmem:[%s270 + $0x60] sm:$0xf]
  %v296 = vld [vmem:[%s270 + $0x64] sm:$0xf]
  %v297 = vld [vmem:[%s270 + $0x68] sm:$0xf]
  %v298 = vld [vmem:[%s270 + $0x6c] sm:$0xf]
  %v299 = vld [vmem:[%s270 + $0x70] sm:$0xf]
  %v300 = vld [vmem:[%s270 + $0x74] sm:$0xf]
  %v301 = vld [vmem:[%s270 + $0x78] sm:$0xf]
  %v302 = vld [vmem:[%s270 + $0x7c] sm:$0xf]
  %v303 = vld [vmem:[%s270 + $0x80] sm:$0xf]
  %v304 = vld [vmem:[%s270 + $0x84] sm:$0xf]
  %v305 = vld [vmem:[%s270 + $0x88] sm:$0xf]
  %v306 = vld [vmem:[%s270 + $0x8c] sm:$0xf]
  %v343 = vunpack.c.l.b16 %v271
  %v344 = vunpack.c.l.b16 %v272
  %v345 = vunpack.c.l.b16 %v273
  %v346 = vunpack.c.l.b16 %v274
  %v347 = vunpack.c.l.b16 %v275
  %v348 = vunpack.c.l.b16 %v276
  %v349 = vunpack.c.l.b16 %v277
  %v350 = vunpack.c.l.b16 %v278
  %v351 = vunpack.c.l.b16 %v279
  %v352 = vunpack.c.l.b16 %v280
  %v353 = vunpack.c.l.b16 %v281
  %v354 = vunpack.c.l.b16 %v282
  %v355 = vunpack.c.l.b16 %v283
  %v356 = vunpack.c.l.b16 %v284
  %v357 = vunpack.c.l.b16 %v285
  %v358 = vunpack.c.l.b16 %v286
  %v359 = vunpack.c.l.b16 %v287
  %v360 = vunpack.c.l.b16 %v288
  %v361 = vunpack.c.l.b16 %v289
  %v362 = vunpack.c.l.b16 %v290
  %v363 = vunpack.c.l.b16 %v291
  %v364 = vunpack.c.l.b16 %v292
  %v365 = vunpack.c.l.b16 %v293
  %v366 = vunpack.c.l.b16 %v294
  %v367 = vunpack.c.l.b16 %v295
  %v368 = vunpack.c.l.b16 %v296
  %v369 = vunpack.c.l.b16 %v297
  %v370 = vunpack.c.l.b16 %v298
  %v371 = vunpack.c.l.b16 %v299
  %v372 = vunpack.c.l.b16 %v300
  %v373 = vunpack.c.l.b16 %v301
  %v374 = vunpack.c.l.b16 %v302
  %v375 = vunpack.c.l.b16 %v303
  %v376 = vunpack.c.l.b16 %v304
  %v377 = vunpack.c.l.b16 %v305
  %v378 = vunpack.c.l.b16 %v306
  %v379 = vpack.c.b16 %v344, %v343
  %v380 = vpack.c.b16 %v346, %v345
  %v381 = vpack.c.b16 %v348, %v347
  %v382 = vpack.c.b16 %v350, %v349
  %v383 = vpack.c.b16 %v352, %v351
  %v384 = vpack.c.b16 %v354, %v353
  %v385 = vpack.c.b16 %v356, %v355
  %v386 = vpack.c.b16 %v358, %v357
  %v387 = vpack.c.b16 %v360, %v359
  %v388 = vpack.c.b16 %v362, %v361
  %v389 = vpack.c.b16 %v364, %v363
  %v390 = vpack.c.b16 %v366, %v365
  %v391 = vpack.c.b16 %v368, %v367
  %v392 = vpack.c.b16 %v370, %v369
  %v393 = vpack.c.b16 %v372, %v371
  %v394 = vpack.c.b16 %v374, %v373
  %v395 = vpack.c.b16 %v376, %v375
  %v396 = vpack.c.b16 %v378, %v377
  %415 = vmatprep.subr.bf16.mxu0 0
  %416 = vmatpush1.bf16.msra.mxu0 %v386
  %417 = vmatprep.subr.bf16.mxu0 0
  %418 = vmatpush1.bf16.msra.mxu0 %v385
  %419 = vmatprep.subr.bf16.mxu0 0
  %420 = vmatpush1.bf16.msra.mxu0 %v384
  %421 = vmatprep.subr.bf16.mxu0 0
  %422 = vmatpush1.bf16.msra.mxu0 %v383
  %423 = vmatprep.subr.bf16.mxu0 0
  %424 = vmatpush1.bf16.msra.mxu0 %v382
  %425 = vmatprep.subr.bf16.mxu0 0
  %426 = vmatpush1.bf16.msra.mxu0 %v381
  %427 = vmatprep.subr.bf16.mxu0 0
  %428 = vmatpush1.bf16.msra.mxu0 %v380
  %429 = vmatprep.subr.bf16.mxu0 0
  %430 = vmatpush1.bf16.msra.mxu0 %v379
  %431 = vmatprep.subr.bf16.mxu0 0
  %432 = vmatpush2.bf16.msra.mxu0 %v394
  %433 = vmatprep.subr.bf16.mxu0 0
  %434 = vmatpush2.bf16.msra.mxu0 %v393
  %435 = vmatprep.subr.bf16.mxu0 0
  %436 = vmatpush2.bf16.msra.mxu0 %v392
  %437 = vmatprep.subr.bf16.mxu0 0
  %438 = vmatpush2.bf16.msra.mxu0 %v391
  %439 = vmatprep.subr.bf16.mxu0 0
  %440 = vmatpush2.bf16.msra.mxu0 %v390
  %441 = vmatprep.subr.bf16.mxu0 0
  %442 = vmatpush2.bf16.msra.mxu0 %v389
  %443 = vmatprep.subr.bf16.mxu0 0
  %444 = vmatpush2.bf16.msra.mxu0 %v388
  %445 = vmatprep.subr.bf16.mxu0 0
  %446 = vmatpush2.bf16.msra.mxu0 %v387
  %447 = vmatprep.mubr.bf16.mxu0 %v72
  %448 = vmatmul.mubr.bf16.gmra.mxu0 %v71
  %v449 = vpop.f32.mrf.mxu0
  %v450 = vadd.f32 0.0, %v449
  %v451 = vpop.f32.mrf.mxu0
  %v452 = vpop.f32.mrf.mxu0
  %v453 = vadd.f32 0.0, %v452
  %v454 = vpop.f32.mrf.mxu0
  %455 = vdwg.mxu0
  %456 = vmatprep.subr.bf16.mxu0 0
  %457 = vmatpush1.bf16.msra.mxu0 0
  %458 = vmatprep.subr.bf16.mxu0 0
  %459 = vmatpush1.bf16.msra.mxu0 0
  %460 = vmatprep.subr.bf16.mxu0 0
  %461 = vmatpush1.bf16.msra.mxu0 0
  %462 = vmatprep.subr.bf16.mxu0 0
  %463 = vmatpush1.bf16.msra.mxu0 0
  %464 = vmatprep.subr.bf16.mxu0 0
  %465 = vmatpush1.bf16.msra.mxu0 0
  %466 = vmatprep.subr.bf16.mxu0 0
  %467 = vmatpush1.bf16.msra.mxu0 0
  %468 = vmatprep.subr.bf16.mxu0 0
  %469 = vmatpush1.bf16.msra.mxu0 %v396
  %470 = vmatprep.subr.bf16.mxu0 0
  %471 = vmatpush1.bf16.msra.mxu0 %v395
  %472 = vmatprep.subr.bf16.mxu0 0
  %473 = vmatpush2.bf16.msra.mxu0 0
  %474 = vmatprep.subr.bf16.mxu0 0
  %475 = vmatpush2.bf16.msra.mxu0 0
  %476 = vmatprep.subr.bf16.mxu0 0
  %477 = vmatpush2.bf16.msra.mxu0 0
  %478 = vmatprep.subr.bf16.mxu0 0
  %479 = vmatpush2.bf16.msra.mxu0 0
  %480 = vmatprep.subr.bf16.mxu0 0
  %481 = vmatpush2.bf16.msra.mxu0 0
  %482 = vmatprep.subr.bf16.mxu0 0
  %483 = vmatpush2.bf16.msra.mxu0 0
  %484 = vmatprep.subr.bf16.mxu0 0
  %485 = vmatpush2.bf16.msra.mxu0 0
  %486 = vmatprep.subr.bf16.mxu0 0
  %487 = vmatpush2.bf16.msra.mxu0 0
  %488 = vmatprep.mubr.bf16.mxu0 0
  %489 = vmatmul.mubr.bf16.gmra.mxu0 %v186
  %v490 = vpop.f32.mrf.mxu0
  %v491 = vadd.f32 %v450, %v490
  %v492 = vpop.f32.mrf.mxu0
  %v493 = vpop.f32.mrf.mxu0
  %v494 = vadd.f32 %v453, %v493
  %v495 = vpop.f32.mrf.mxu0
  %496 = vdwg.mxu0
  %v497 = vmax.f32 %v264, %v491
  %v498 = vmax.f32 %v267, %v494
  %s499 = scalar_lea.vmem %s0, 288
  %v500 = vld [vmem:[%s499] sm:$0xf]
  %v501 = vld [vmem:[%s499 + $0x4] sm:$0xf]
  %v502 = vld [vmem:[%s499 + $0x8] sm:$0xf]
  %v503 = vld [vmem:[%s499 + $0xc] sm:$0xf]
  %v504 = vld [vmem:[%s499 + $0x10] sm:$0xf]
  %v505 = vld [vmem:[%s499 + $0x14] sm:$0xf]
  %v506 = vld [vmem:[%s499 + $0x18] sm:$0xf]
  %v507 = vld [vmem:[%s499 + $0x1c] sm:$0xf]
  %v508 = vld [vmem:[%s499 + $0x20] sm:$0xf]
  %v509 = vld [vmem:[%s499 + $0x24] sm:$0xf]
  %v510 = vld [vmem:[%s499 + $0x28] sm:$0xf]
  %v511 = vld [vmem:[%s499 + $0x2c] sm:$0xf]
  %v512 = vld [vmem:[%s499 + $0x30] sm:$0xf]
  %v513 = vld [vmem:[%s499 + $0x34] sm:$0xf]
  %v514 = vld [vmem:[%s499 + $0x38] sm:$0xf]
  %v515 = vld [vmem:[%s499 + $0x3c] sm:$0xf]
  %v516 = vld [vmem:[%s499 + $0x40] sm:$0xf]
  %v517 = vld [vmem:[%s499 + $0x44] sm:$0xf]
  %v518 = vld [vmem:[%s499 + $0x48] sm:$0xf]
  %v519 = vld [vmem:[%s499 + $0x4c] sm:$0xf]
  %v520 = vld [vmem:[%s499 + $0x50] sm:$0xf]
  %v521 = vld [vmem:[%s499 + $0x54] sm:$0xf]
  %v522 = vld [vmem:[%s499 + $0x58] sm:$0xf]
  %v523 = vld [vmem:[%s499 + $0x5c] sm:$0xf]
  %v524 = vld [vmem:[%s499 + $0x60] sm:$0xf]
  %v525 = vld [vmem:[%s499 + $0x64] sm:$0xf]
  %v526 = vld [vmem:[%s499 + $0x68] sm:$0xf]
  %v527 = vld [vmem:[%s499 + $0x6c] sm:$0xf]
  %v528 = vld [vmem:[%s499 + $0x70] sm:$0xf]
  %v529 = vld [vmem:[%s499 + $0x74] sm:$0xf]
  %v530 = vld [vmem:[%s499 + $0x78] sm:$0xf]
  %v531 = vld [vmem:[%s499 + $0x7c] sm:$0xf]
  %v532 = vld [vmem:[%s499 + $0x80] sm:$0xf]
  %v533 = vld [vmem:[%s499 + $0x84] sm:$0xf]
  %v534 = vld [vmem:[%s499 + $0x88] sm:$0xf]
  %v535 = vld [vmem:[%s499 + $0x8c] sm:$0xf]
  %v572 = vunpack.c.l.b16 %v500
  %v573 = vunpack.c.l.b16 %v501
  %v574 = vunpack.c.l.b16 %v502
  %v575 = vunpack.c.l.b16 %v503
  %v576 = vunpack.c.l.b16 %v504
  %v577 = vunpack.c.l.b16 %v505
  %v578 = vunpack.c.l.b16 %v506
  %v579 = vunpack.c.l.b16 %v507
  %v580 = vunpack.c.l.b16 %v508
  %v581 = vunpack.c.l.b16 %v509
  %v582 = vunpack.c.l.b16 %v510
  %v583 = vunpack.c.l.b16 %v511
  %v584 = vunpack.c.l.b16 %v512
  %v585 = vunpack.c.l.b16 %v513
  %v586 = vunpack.c.l.b16 %v514
  %v587 = vunpack.c.l.b16 %v515
  %v588 = vunpack.c.l.b16 %v516
  %v589 = vunpack.c.l.b16 %v517
  %v590 = vunpack.c.l.b16 %v518
  %v591 = vunpack.c.l.b16 %v519
  %v592 = vunpack.c.l.b16 %v520
  %v593 = vunpack.c.l.b16 %v521
  %v594 = vunpack.c.l.b16 %v522
  %v595 = vunpack.c.l.b16 %v523
  %v596 = vunpack.c.l.b16 %v524
  %v597 = vunpack.c.l.b16 %v525
  %v598 = vunpack.c.l.b16 %v526
  %v599 = vunpack.c.l.b16 %v527
  %v600 = vunpack.c.l.b16 %v528
  %v601 = vunpack.c.l.b16 %v529
  %v602 = vunpack.c.l.b16 %v530
  %v603 = vunpack.c.l.b16 %v531
  %v604 = vunpack.c.l.b16 %v532
  %v605 = vunpack.c.l.b16 %v533
  %v606 = vunpack.c.l.b16 %v534
  %v607 = vunpack.c.l.b16 %v535
  %v608 = vpack.c.b16 %v573, %v572
  %v609 = vpack.c.b16 %v575, %v574
  %v610 = vpack.c.b16 %v577, %v576
  %v611 = vpack.c.b16 %v579, %v578
  %v612 = vpack.c.b16 %v581, %v580
  %v613 = vpack.c.b16 %v583, %v582
  %v614 = vpack.c.b16 %v585, %v584
  %v615 = vpack.c.b16 %v587, %v586
  %v616 = vpack.c.b16 %v589, %v588
  %v617 = vpack.c.b16 %v591, %v590
  %v618 = vpack.c.b16 %v593, %v592
  %v619 = vpack.c.b16 %v595, %v594
  %v620 = vpack.c.b16 %v597, %v596
  %v621 = vpack.c.b16 %v599, %v598
  %v622 = vpack.c.b16 %v601, %v600
  %v623 = vpack.c.b16 %v603, %v602
  %v624 = vpack.c.b16 %v605, %v604
  %v625 = vpack.c.b16 %v607, %v606
  %644 = vmatprep.subr.bf16.mxu0 0
  %645 = vmatpush1.bf16.msra.mxu0 %v615
  %646 = vmatprep.subr.bf16.mxu0 0
  %647 = vmatpush1.bf16.msra.mxu0 %v614
  %648 = vmatprep.subr.bf16.mxu0 0
  %649 = vmatpush1.bf16.msra.mxu0 %v613
  %650 = vmatprep.subr.bf16.mxu0 0
  %651 = vmatpush1.bf16.msra.mxu0 %v612
  %652 = vmatprep.subr.bf16.mxu0 0
  %653 = vmatpush1.bf16.msra.mxu0 %v611
  %654 = vmatprep.subr.bf16.mxu0 0
  %655 = vmatpush1.bf16.msra.mxu0 %v610
  %656 = vmatprep.subr.bf16.mxu0 0
  %657 = vmatpush1.bf16.msra.mxu0 %v609
  %658 = vmatprep.subr.bf16.mxu0 0
  %659 = vmatpush1.bf16.msra.mxu0 %v608
  %660 = vmatprep.subr.bf16.mxu0 0
  %661 = vmatpush2.bf16.msra.mxu0 %v623
  %662 = vmatprep.subr.bf16.mxu0 0
  %663 = vmatpush2.bf16.msra.mxu0 %v622
  %664 = vmatprep.subr.bf16.mxu0 0
  %665 = vmatpush2.bf16.msra.mxu0 %v621
  %666 = vmatprep.subr.bf16.mxu0 0
  %667 = vmatpush2.bf16.msra.mxu0 %v620
  %668 = vmatprep.subr.bf16.mxu0 0
  %669 = vmatpush2.bf16.msra.mxu0 %v619
  %670 = vmatprep.subr.bf16.mxu0 0
  %671 = vmatpush2.bf16.msra.mxu0 %v618
  %672 = vmatprep.subr.bf16.mxu0 0
  %673 = vmatpush2.bf16.msra.mxu0 %v617
  %674 = vmatprep.subr.bf16.mxu0 0
  %675 = vmatpush2.bf16.msra.mxu0 %v616
  %676 = vmatprep.mubr.bf16.mxu0 %v72
  %677 = vmatmul.mubr.bf16.gmra.mxu0 %v71
  %v678 = vpop.f32.mrf.mxu0
  %v679 = vadd.f32 0.0, %v678
  %v680 = vpop.f32.mrf.mxu0
  %v681 = vpop.f32.mrf.mxu0
  %v682 = vadd.f32 0.0, %v681
  %v683 = vpop.f32.mrf.mxu0
  %684 = vdwg.mxu0
  %685 = vmatprep.subr.bf16.mxu0 0
  %686 = vmatpush1.bf16.msra.mxu0 0
  %687 = vmatprep.subr.bf16.mxu0 0
  %688 = vmatpush1.bf16.msra.mxu0 0
  %689 = vmatprep.subr.bf16.mxu0 0
  %690 = vmatpush1.bf16.msra.mxu0 0
  %691 = vmatprep.subr.bf16.mxu0 0
  %692 = vmatpush1.bf16.msra.mxu0 0
  %693 = vmatprep.subr.bf16.mxu0 0
  %694 = vmatpush1.bf16.msra.mxu0 0
  %695 = vmatprep.subr.bf16.mxu0 0
  %696 = vmatpush1.bf16.msra.mxu0 0
  %697 = vmatprep.subr.bf16.mxu0 0
  %698 = vmatpush1.bf16.msra.mxu0 %v625
  %699 = vmatprep.subr.bf16.mxu0 0
  %700 = vmatpush1.bf16.msra.mxu0 %v624
  %701 = vmatprep.subr.bf16.mxu0 0
  %702 = vmatpush2.bf16.msra.mxu0 0
  %703 = vmatprep.subr.bf16.mxu0 0
  %704 = vmatpush2.bf16.msra.mxu0 0
  %705 = vmatprep.subr.bf16.mxu0 0
  %706 = vmatpush2.bf16.msra.mxu0 0
  %707 = vmatprep.subr.bf16.mxu0 0
  %708 = vmatpush2.bf16.msra.mxu0 0
  %709 = vmatprep.subr.bf16.mxu0 0
  %710 = vmatpush2.bf16.msra.mxu0 0
  %711 = vmatprep.subr.bf16.mxu0 0
  %712 = vmatpush2.bf16.msra.mxu0 0
  %713 = vmatprep.subr.bf16.mxu0 0
  %714 = vmatpush2.bf16.msra.mxu0 0
  %715 = vmatprep.subr.bf16.mxu0 0
  %716 = vmatpush2.bf16.msra.mxu0 0
  %717 = vmatprep.mubr.bf16.mxu0 0
  %718 = vmatmul.mubr.bf16.gmra.mxu0 %v186
  %v719 = vpop.f32.mrf.mxu0
  %v720 = vadd.f32 %v679, %v719
  %v721 = vpop.f32.mrf.mxu0
  %v722 = vpop.f32.mrf.mxu0
  %v723 = vadd.f32 %v682, %v722
  %v724 = vpop.f32.mrf.mxu0
  %725 = vdwg.mxu0
  %v726 = vmax.f32 %v497, %v720
  %v727 = vmax.f32 %v498, %v723
  %s728 = scalar_lea.vmem %s0, 432
  %v729 = vld [vmem:[%s728] sm:$0xf]
  %v730 = vld [vmem:[%s728 + $0x4] sm:$0xf]
  %v731 = vld [vmem:[%s728 + $0x8] sm:$0xf]
  %v732 = vld [vmem:[%s728 + $0xc] sm:$0xf]
  %v733 = vld [vmem:[%s728 + $0x10] sm:$0xf]
  %v734 = vld [vmem:[%s728 + $0x14] sm:$0xf]
  %v735 = vld [vmem:[%s728 + $0x18] sm:$0xf]
  %v736 = vld [vmem:[%s728 + $0x1c] sm:$0xf]
  %v737 = vld [vmem:[%s728 + $0x20] sm:$0xf]
  %v738 = vld [vmem:[%s728 + $0x24] sm:$0xf]
  %v739 = vld [vmem:[%s728 + $0x28] sm:$0xf]
  %v740 = vld [vmem:[%s728 + $0x2c] sm:$0xf]
  %v741 = vld [vmem:[%s728 + $0x30] sm:$0xf]
  %v742 = vld [vmem:[%s728 + $0x34] sm:$0xf]
  %v743 = vld [vmem:[%s728 + $0x38] sm:$0xf]
  %v744 = vld [vmem:[%s728 + $0x3c] sm:$0xf]
  %v745 = vld [vmem:[%s728 + $0x40] sm:$0xf]
  %v746 = vld [vmem:[%s728 + $0x44] sm:$0xf]
  %v747 = vld [vmem:[%s728 + $0x48] sm:$0xf]
  %v748 = vld [vmem:[%s728 + $0x4c] sm:$0xf]
  %v749 = vld [vmem:[%s728 + $0x50] sm:$0xf]
  %v750 = vld [vmem:[%s728 + $0x54] sm:$0xf]
  %v751 = vld [vmem:[%s728 + $0x58] sm:$0xf]
  %v752 = vld [vmem:[%s728 + $0x5c] sm:$0xf]
  %v753 = vld [vmem:[%s728 + $0x60] sm:$0xf]
  %v754 = vld [vmem:[%s728 + $0x64] sm:$0xf]
  %v755 = vld [vmem:[%s728 + $0x68] sm:$0xf]
  %v756 = vld [vmem:[%s728 + $0x6c] sm:$0xf]
  %v757 = vld [vmem:[%s728 + $0x70] sm:$0xf]
  %v758 = vld [vmem:[%s728 + $0x74] sm:$0xf]
  %v759 = vld [vmem:[%s728 + $0x78] sm:$0xf]
  %v760 = vld [vmem:[%s728 + $0x7c] sm:$0xf]
  %v761 = vld [vmem:[%s728 + $0x80] sm:$0xf]
  %v762 = vld [vmem:[%s728 + $0x84] sm:$0xf]
  %v763 = vld [vmem:[%s728 + $0x88] sm:$0xf]
  %v764 = vld [vmem:[%s728 + $0x8c] sm:$0xf]
  %v801 = vunpack.c.l.b16 %v729
  %v802 = vunpack.c.l.b16 %v730
  %v803 = vunpack.c.l.b16 %v731
  %v804 = vunpack.c.l.b16 %v732
  %v805 = vunpack.c.l.b16 %v733
  %v806 = vunpack.c.l.b16 %v734
  %v807 = vunpack.c.l.b16 %v735
  %v808 = vunpack.c.l.b16 %v736
  %v809 = vunpack.c.l.b16 %v737
  %v810 = vunpack.c.l.b16 %v738
  %v811 = vunpack.c.l.b16 %v739
  %v812 = vunpack.c.l.b16 %v740
  %v813 = vunpack.c.l.b16 %v741
  %v814 = vunpack.c.l.b16 %v742
  %v815 = vunpack.c.l.b16 %v743
  %v816 = vunpack.c.l.b16 %v744
  %v817 = vunpack.c.l.b16 %v745
  %v818 = vunpack.c.l.b16 %v746
  %v819 = vunpack.c.l.b16 %v747
  %v820 = vunpack.c.l.b16 %v748
  %v821 = vunpack.c.l.b16 %v749
  %v822 = vunpack.c.l.b16 %v750
  %v823 = vunpack.c.l.b16 %v751
  %v824 = vunpack.c.l.b16 %v752
  %v825 = vunpack.c.l.b16 %v753
  %v826 = vunpack.c.l.b16 %v754
  %v827 = vunpack.c.l.b16 %v755
  %v828 = vunpack.c.l.b16 %v756
  %v829 = vunpack.c.l.b16 %v757
  %v830 = vunpack.c.l.b16 %v758
  %v831 = vunpack.c.l.b16 %v759
  %v832 = vunpack.c.l.b16 %v760
  %v833 = vunpack.c.l.b16 %v761
  %v834 = vunpack.c.l.b16 %v762
  %v835 = vunpack.c.l.b16 %v763
  %v836 = vunpack.c.l.b16 %v764
  %v837 = vpack.c.b16 %v802, %v801
  %v838 = vpack.c.b16 %v804, %v803
  %v839 = vpack.c.b16 %v806, %v805
  %v840 = vpack.c.b16 %v808, %v807
  %v841 = vpack.c.b16 %v810, %v809
  %v842 = vpack.c.b16 %v812, %v811
  %v843 = vpack.c.b16 %v814, %v813
  %v844 = vpack.c.b16 %v816, %v815
  %v845 = vpack.c.b16 %v818, %v817
  %v846 = vpack.c.b16 %v820, %v819
  %v847 = vpack.c.b16 %v822, %v821
  %v848 = vpack.c.b16 %v824, %v823
  %v849 = vpack.c.b16 %v826, %v825
  %v850 = vpack.c.b16 %v828, %v827
  %v851 = vpack.c.b16 %v830, %v829
  %v852 = vpack.c.b16 %v832, %v831
  %v853 = vpack.c.b16 %v834, %v833
  %v854 = vpack.c.b16 %v836, %v835
  %873 = vmatprep.subr.bf16.mxu0 0
  %874 = vmatpush1.bf16.msra.mxu0 %v844
  %875 = vmatprep.subr.bf16.mxu0 0
  %876 = vmatpush1.bf16.msra.mxu0 %v843
  %877 = vmatprep.subr.bf16.mxu0 0
  %878 = vmatpush1.bf16.msra.mxu0 %v842
  %879 = vmatprep.subr.bf16.mxu0 0
  %880 = vmatpush1.bf16.msra.mxu0 %v841
  %881 = vmatprep.subr.bf16.mxu0 0
  %882 = vmatpush1.bf16.msra.mxu0 %v840
  %883 = vmatprep.subr.bf16.mxu0 0
  %884 = vmatpush1.bf16.msra.mxu0 %v839
  %885 = vmatprep.subr.bf16.mxu0 0
  %886 = vmatpush1.bf16.msra.mxu0 %v838
  %887 = vmatprep.subr.bf16.mxu0 0
  %888 = vmatpush1.bf16.msra.mxu0 %v837
  %889 = vmatprep.subr.bf16.mxu0 0
  %890 = vmatpush2.bf16.msra.mxu0 %v852
  %891 = vmatprep.subr.bf16.mxu0 0
  %892 = vmatpush2.bf16.msra.mxu0 %v851
  %893 = vmatprep.subr.bf16.mxu0 0
  %894 = vmatpush2.bf16.msra.mxu0 %v850
  %895 = vmatprep.subr.bf16.mxu0 0
  %896 = vmatpush2.bf16.msra.mxu0 %v849
  %897 = vmatprep.subr.bf16.mxu0 0
  %898 = vmatpush2.bf16.msra.mxu0 %v848
  %899 = vmatprep.subr.bf16.mxu0 0
  %900 = vmatpush2.bf16.msra.mxu0 %v847
  %901 = vmatprep.subr.bf16.mxu0 0
  %902 = vmatpush2.bf16.msra.mxu0 %v846
  %903 = vmatprep.subr.bf16.mxu0 0
  %904 = vmatpush2.bf16.msra.mxu0 %v845
  %905 = vmatprep.mubr.bf16.mxu0 %v72
  %906 = vmatmul.mubr.bf16.gmra.mxu0 %v71
  %v907 = vpop.f32.mrf.mxu0
  %v908 = vadd.f32 0.0, %v907
  %v909 = vpop.f32.mrf.mxu0
  %v910 = vpop.f32.mrf.mxu0
  %v911 = vadd.f32 0.0, %v910
  %v912 = vpop.f32.mrf.mxu0
  %913 = vdwg.mxu0
  %914 = vmatprep.subr.bf16.mxu0 0
  %915 = vmatpush1.bf16.msra.mxu0 0
  %916 = vmatprep.subr.bf16.mxu0 0
  %917 = vmatpush1.bf16.msra.mxu0 0
  %918 = vmatprep.subr.bf16.mxu0 0
  %919 = vmatpush1.bf16.msra.mxu0 0
  %920 = vmatprep.subr.bf16.mxu0 0
  %921 = vmatpush1.bf16.msra.mxu0 0
  %922 = vmatprep.subr.bf16.mxu0 0
  %923 = vmatpush1.bf16.msra.mxu0 0
  %924 = vmatprep.subr.bf16.mxu0 0
  %925 = vmatpush1.bf16.msra.mxu0 0
  %926 = vmatprep.subr.bf16.mxu0 0
  %927 = vmatpush1.bf16.msra.mxu0 %v854
  %928 = vmatprep.subr.bf16.mxu0 0
  %929 = vmatpush1.bf16.msra.mxu0 %v853
  %930 = vmatprep.subr.bf16.mxu0 0
  %931 = vmatpush2.bf16.msra.mxu0 0
  %932 = vmatprep.subr.bf16.mxu0 0
  %933 = vmatpush2.bf16.msra.mxu0 0
  %934 = vmatprep.subr.bf16.mxu0 0
  %935 = vmatpush2.bf16.msra.mxu0 0
  %936 = vmatprep.subr.bf16.mxu0 0
  %937 = vmatpush2.bf16.msra.mxu0 0
  %938 = vmatprep.subr.bf16.mxu0 0
  %939 = vmatpush2.bf16.msra.mxu0 0
  %940 = vmatprep.subr.bf16.mxu0 0
  %941 = vmatpush2.bf16.msra.mxu0 0
  %942 = vmatprep.subr.bf16.mxu0 0
  %943 = vmatpush2.bf16.msra.mxu0 0
  %944 = vmatprep.subr.bf16.mxu0 0
  %945 = vmatpush2.bf16.msra.mxu0 0
  %946 = vmatprep.mubr.bf16.mxu0 0
  %947 = vmatmul.mubr.bf16.gmra.mxu0 %v186
  %v948 = vpop.f32.mrf.mxu0
  %v949 = vadd.f32 %v908, %v948
  %v950 = vpop.f32.mrf.mxu0
  %v951 = vpop.f32.mrf.mxu0
  %v952 = vadd.f32 %v911, %v951
  %v953 = vpop.f32.mrf.mxu0
  %954 = vdwg.mxu0
  %v955 = vmax.f32 %v726, %v949
  %v956 = vmax.f32 %v727, %v952
  %v957 = vld [vmem:[%s2] sm:$0xff]
  %v958 = vld [vmem:[%s2 + $0x8] sm:$0xff]
  %960 = vset.pattern.permute.xlu0 0
  %961 = vperm.xlu0 %960, %v957
  %v962 = vpop.permute.xlu0 %961
  %965 = vset.pattern.permute.xlu0 0
  %966 = vperm.xlu0 %965, %v958
  %v967 = vpop.permute.xlu0 %966
  %v969 = vadd.f32 %v955, %v962
  %v970 = vadd.f32 %v956, %v967
  %v971 = vmax.f32 %v969, 0.0
  %v972 = vmax.f32 %v970, 0.0
  %v973 = vld [vmem:[%s3] sm:$0xff]
  %v974 = vld [vmem:[%s3 + $0x8] sm:$0x3]
  %v975 = vld [vmem:[%s4] sm:$0xff]
  %v976 = vld [vmem:[%s4 + $0x8] sm:$0x3]
  %978 = vset.pattern.permute.xlu0 0
  %979 = vperm.xlu0 %978, %v975
  %v980 = vpop.permute.xlu0 %979
  %983 = vset.pattern.permute.xlu0 0
  %984 = vperm.xlu0 %983, %v976
  %v985 = vpop.permute.xlu0 %984
  %vm987 = vcmask 130048
  %v989 = vsel %vm987, %v973, 0
  %v992 = vsel %vm987, %v974, 0
  %994 = vmatprep.subr.mxu0 0.0
  %995 = vmatpush1.msra.mxu0 0.0
  %996 = vmatprep.subr.mxu0 0.0
  %997 = vmatpush1.msra.mxu0 0.0
  %998 = vmatprep.subr.mxu0 0.0
  %999 = vmatpush1.msra.mxu0 0.0
  %1000 = vmatprep.subr.mxu0 0.0
  %1001 = vmatpush1.msra.mxu0 0.0
  %1002 = vmatprep.subr.mxu0 0.0
  %1003 = vmatpush1.msra.mxu0 0.0
  %1004 = vmatprep.subr.mxu0 0.0
  %1005 = vmatpush1.msra.mxu0 0.0
  %1006 = vmatprep.subr.mxu0 0.0
  %1007 = vmatpush1.msra.mxu0 0.0
  %1008 = vmatprep.subr.mxu0 0.0
  %1009 = vmatpush1.msra.mxu0 0.0
  %1010 = vmatprep.subr.mxu0 0.0
  %1011 = vmatpush1.msra.mxu0 0.0
  %1012 = vmatprep.subr.mxu0 0.0
  %1013 = vmatpush1.msra.mxu0 0.0
  %1014 = vmatprep.subr.mxu0 0.0
  %1015 = vmatpush1.msra.mxu0 0.0
  %1016 = vmatprep.subr.mxu0 0.0
  %1017 = vmatpush1.msra.mxu0 0.0
  %1018 = vmatprep.subr.mxu0 0.0
  %1019 = vmatpush1.msra.mxu0 0.0
  %1020 = vmatprep.subr.mxu0 0.0
  %1021 = vmatpush1.msra.mxu0 0.0
  %1022 = vmatprep.subr.mxu0 0.0
  %1023 = vmatpush1.msra.mxu0 %v972
  %1024 = vmatprep.subr.mxu0 0.0
  %1025 = vmatpush1.msra.mxu0 %v971
  %1026 = vmatprep.subr.mxu0 0.0
  %1027 = vmatpush2.msra.mxu0 0.0
  %1028 = vmatprep.subr.mxu0 0.0
  %1029 = vmatpush2.msra.mxu0 0.0
  %1030 = vmatprep.subr.mxu0 0.0
  %1031 = vmatpush2.msra.mxu0 0.0
  %1032 = vmatprep.subr.mxu0 0.0
  %1033 = vmatpush2.msra.mxu0 0.0
  %1034 = vmatprep.subr.mxu0 0.0
  %1035 = vmatpush2.msra.mxu0 0.0
  %1036 = vmatprep.subr.mxu0 0.0
  %1037 = vmatpush2.msra.mxu0 0.0
  %1038 = vmatprep.subr.mxu0 0.0
  %1039 = vmatpush2.msra.mxu0 0.0
  %1040 = vmatprep.subr.mxu0 0.0
  %1041 = vmatpush2.msra.mxu0 0.0
  %1042 = vmatprep.subr.mxu0 0.0
  %1043 = vmatpush2.msra.mxu0 0.0
  %1044 = vmatprep.subr.mxu0 0.0
  %1045 = vmatpush2.msra.mxu0 0.0
  %1046 = vmatprep.subr.mxu0 0.0
  %1047 = vmatpush2.msra.mxu0 0.0
  %1048 = vmatprep.subr.mxu0 0.0
  %1049 = vmatpush2.msra.mxu0 0.0
  %1050 = vmatprep.subr.mxu0 0.0
  %1051 = vmatpush2.msra.mxu0 0.0
  %1052 = vmatprep.subr.mxu0 0.0
  %1053 = vmatpush2.msra.mxu0 0.0
  %1054 = vmatprep.subr.mxu0 0.0
  %1055 = vmatpush2.msra.mxu0 0.0
  %1056 = vmatprep.subr.mxu0 0.0
  %1057 = vmatpush2.msra.mxu0 0.0
  %1058 = vmatprep.mubr.f32.mxu0 0.0
  %1059 = vmatmul.mubr.f32.gmra.mxu0 %v989
  %v1060 = vpop.f32.mrf.mxu0
  %v1061 = vadd.f32 %v980, %v1060
  %v1062 = vpop.f32.mrf.mxu0
  %1063 = vmatprep.mubr.f32.mxu0 0.0
  %1064 = vmatmul.mubr.f32.gmra.mxu0 %v992
  %v1065 = vpop.f32.mrf.mxu0
  %v1066 = vadd.f32 %v985, %v1065
  %v1067 = vpop.f32.mrf.mxu0
  %1068 = vdwg.mxu0
  %1069 = vst [vmem:[%s5] sm:$0xff] %v1061
  %1070 = vst [vmem:[%s5 + $0x8] sm:$0x3] %v1066
  // Predicated region
  $region22: #{mnist_cnn_forward.5} parent=0 // pred_check
    _
  $region23: #{mnist_cnn_forward.5} parent=0 // pred_check_branch
    %1072 = sbr.rel (0) target = $region25
  $region24: #{mnist_cnn_forward.5} parent=0 // pred_region
    _
  $region25: #{mnist_cnn_forward.5} parent=0 // pred_fallthru
    _
  // Predicated region
  $region26: #{mnist_cnn_forward.5} parent=0 // pred_check
    _
  $region27: #{mnist_cnn_forward.5} parent=0 // pred_check_branch
    %1074 = sbr.rel (0) target = $region29
  $region28: #{mnist_cnn_forward.5} parent=0 // pred_region
    _
  $region29: #{mnist_cnn_forward.5} parent=0 // pred_fallthru
    _

</llo_original>
